<compile_context>
chip_gen: v7x
topology: tpu7x:2x2x1
jax: 0.10.0
libtpu: 0.0.40
codegen_flags: <defaults>
</compile_context>

<pallas_src>
import functools
import math

import jax
import jax.numpy as jnp
from jax import lax
from jax.experimental import pallas as pl
from jax.experimental.pallas import tpu as pltpu

BN_EPS = 1e-5


def _r8(n):
    return ((n + 7) // 8) * 8


# --------------------------------------------------------------------------
# Kernel: one graph per grid step, both GIN layers fused, params resident.
# --------------------------------------------------------------------------
def _gin_fused_kernel(x_ref, eattr_ref, dstw_ref, w_ref, b_ref, out_ref, *, dims):
    n = x_ref.shape[1]          # nodes per graph
    e = eattr_ref.shape[1]      # edges per graph
    d_e = dims["d_e"]

    x = x_ref[0]                # [N, d_in]   node features (K padded to 8)
    ea = eattr_ref[0]           # [E, d_e]    edge_attr | src-index | pad
    dw = dstw_ref[0]            # [8, E]      row0 = dst-index, row1 = edge_weight

    # Gather operator [E, N]: src_oh[e, i] = (src[e] == i)   (built on the VPU,
    # never materialized in HBM).
    src = ea[:, dims["col_src"]:dims["col_src"] + 1].astype(jnp.int32)      # [E,1]
    src_oh = (src == lax.broadcasted_iota(jnp.int32, (e, n), 1)).astype(jnp.float32)

    # Weighted scatter operator [N, E]: scat[i, e] = (dst[e] == i) * edge_weight[e]
    # (edge_weight folded here -> no per-layer [E,F] multiply).
    dst = dw[0:1, :].astype(jnp.int32)                                       # [1,E]
    ew = dw[1:2, :]                                                          # [1,E]
    scat = ((dst == lax.broadcasted_iota(jnp.int32, (n, e), 0)).astype(jnp.float32)
            * ew)

    def layer(h, lp):
        f_in, f_mid, f_out = lp["f_in"], lp["f_mid"], lp["f_out"]
        r = lp["wenc"]; wenc = w_ref[r:r + d_e, :f_in]
        r = lp["w1"];   w1 = w_ref[r:r + f_in, :f_mid]
        r = lp["w2"];   w2 = w_ref[r:r + f_mid, :f_out]
        br = lp["brow"]
        benc = b_ref[br + 0:br + 1, :f_in]
        b1 = b_ref[br + 1:br + 2, :f_mid]
        b2 = b_ref[br + 2:br + 3, :f_out]
        gamma = b_ref[br + 3:br + 4, :f_out]
        beta = b_ref[br + 4:br + 5, :f_out]

        # Edge encoder (MXU). Rows of wenc beyond edge_dim are zero, so the
        # src-index / pad columns of `ea` contribute nothing.
        emb = jnp.dot(ea, wenc, preferred_element_type=jnp.float32) + benc   # [E,f_in]
        # Gather x_src per edge (MXU).
        xj = jnp.dot(src_oh, h, preferred_element_type=jnp.float32)          # [E,f_in]
        msg = jnp.maximum(xj + emb, 0.0)                                      # [E,f_in]
        # Weighted scatter-add onto destination nodes (MXU).
        agg = jnp.dot(scat, msg, preferred_element_type=jnp.float32)         # [N,f_in]
        z = h + agg                                   # (1 + eps) * h with eps == 0
        # GIN MLP: Linear -> ReLU -> Linear.
        z = jnp.maximum(jnp.dot(z, w1, preferred_element_type=jnp.float32) + b1, 0.0)
        z = jnp.dot(z, w2, preferred_element_type=jnp.float32) + b2
        a = jnp.maximum(z, 0.0)                       # F.relu after the conv
        # BatchNorm1d, training-mode (biased) batch statistics over this graph.
        mu = jnp.mean(a, axis=0, keepdims=True)
        var = jnp.mean((a - mu) ** 2, axis=0, keepdims=True)
        return (a - mu) * lax.rsqrt(var + BN_EPS) * gamma + beta

    h1 = layer(x, dims["layer1"])
    out_ref[0] = layer(h1, dims["layer2"])


# --------------------------------------------------------------------------
# Parameter init (PyTorch-style) and packing into two lane-aligned slabs.
# --------------------------------------------------------------------------
def init_params(key, input_dim, hidden_dim, edge_dim):
    def linear(k, fan_in, fan_out):
        k1, k2 = jax.random.split(k)
        lim = 1.0 / math.sqrt(fan_in)
        w = jax.random.uniform(k1, (fan_in, fan_out), jnp.float32, -lim, lim)
        b = jax.random.uniform(k2, (fan_out,), jnp.float32, -lim, lim)
        return w, b

    keys = jax.random.split(key, 6)
    wenc1, benc1 = linear(keys[0], edge_dim, input_dim)
    w11, b11 = linear(keys[1], input_dim, hidden_dim * 2)
    w12, b12 = linear(keys[2], hidden_dim * 2, hidden_dim)
    g1 = jnp.ones((hidden_dim,), jnp.float32)
    be1 = jnp.zeros((hidden_dim,), jnp.float32)

    wenc2, benc2 = linear(keys[3], edge_dim, hidden_dim)
    w21, b21 = linear(keys[4], hidden_dim, hidden_dim * 2)
    w22, b22 = linear(keys[5], hidden_dim * 2, 2)
    g2 = jnp.ones((2,), jnp.float32)
    be2 = jnp.zeros((2,), jnp.float32)

    return ((wenc1, benc1, w11, b11, w12, b12, g1, be1),
            (wenc2, benc2, w21, b21, w22, b22, g2, be2))


def pack_params(layer1, layer2, input_dim, hidden_dim, edge_dim):
    d_e = _r8(edge_dim + 1)                 # edge_attr cols + 1 col for src index
    d_in = _r8(input_dim)
    d_h = _r8(hidden_dim)
    d_h2 = _r8(2 * hidden_dim)
    d_out = _r8(2)
    w_lane = max(d_in, d_h, d_h2, d_out)    # common slab lane width (64 here)

    def padw(w, rows):
        w = jnp.asarray(w, jnp.float32)
        return jnp.pad(w, ((0, rows - w.shape[0]), (0, w_lane - w.shape[1])))

    def padv(v, fill=0.0):
        v = jnp.asarray(v, jnp.float32).reshape(1, -1)
        return jnp.pad(v, ((0, 0), (0, w_lane - v.shape[1])), constant_values=fill)

    wenc1, benc1, w11, b11, w12, b12, g1, be1 = layer1
    wenc2, benc2, w21, b21, w22, b22, g2, be2 = layer2

    blocks = [("wenc1", padw(wenc1, d_e)), ("w11", padw(w11, d_in)),
              ("w12", padw(w12, d_h2)), ("wenc2", padw(wenc2, d_e)),
              ("w21", padw(w21, d_h)), ("w22", padw(w22, d_h2))]
    offsets, row = {}, 0
    for name, blk in blocks:
        offsets[name] = row
        row += blk.shape[0]
    w_slab = jnp.concatenate([blk for _, blk in blocks], axis=0)
    if _r8(w_slab.shape[0]) != w_slab.shape[0]:
        w_slab = jnp.pad(w_slab, ((0, _r8(w_slab.shape[0]) - w_slab.shape[0]), (0, 0)))

    b_rows = [padv(benc1), padv(b11), padv(b12), padv(g1, 1.0), padv(be1),
              padv(benc2), padv(b21), padv(b22), padv(g2, 1.0), padv(be2)]
    b_slab = jnp.concatenate(b_rows, axis=0)
    b_slab = jnp.pad(b_slab, ((0, _r8(b_slab.shape[0]) - b_slab.shape[0]), (0, 0)))

    layout = {
        "d_e": d_e, "d_in": d_in, "d_h": d_h, "d_h2": d_h2, "d_out": d_out,
        "w_lane": w_lane, "col_src": edge_dim,
        "layer1": {"wenc": offsets["wenc1"], "w1": offsets["w11"], "w2": offsets["w12"],
                   "f_in": d_in, "f_mid": d_h2, "f_out": d_h, "brow": 0},
        "layer2": {"wenc": offsets["wenc2"], "w1": offsets["w21"], "w2": offsets["w22"],
                   "f_in": d_h, "f_mid": d_h2, "f_out": d_out, "brow": 5},
    }
    return w_slab, b_slab, layout


def _estimate_cost(layout, g, n, e):
    def lf(f_in, f_mid, f_out):
        return 2 * (e * layout["d_e"] * f_in + 2 * e * n * f_in
                    + n * f_in * f_mid + n * f_mid * f_out)
    flops = g * (lf(layout["d_in"], layout["d_h2"], layout["d_h"])
                 + lf(layout["d_h"], layout["d_h2"], layout["d_out"]))
    transcendentals = g * (layout["d_h"] + layout["d_out"])    # rsqrt per BN channel
    return int(flops), int(transcendentals)


# --------------------------------------------------------------------------
# Wrapper: batch of G same-shaped graphs, one grid step per graph.
# --------------------------------------------------------------------------
def make_forward(layout):
    d_in, d_e, d_out = layout["d_in"], layout["d_e"], layout["d_out"]
    col_src = layout["col_src"]

    @jax.jit
    def forward(x, edge_index, edge_attr, edge_weight, w_slab, b_slab):
        """x: [G,N,input_dim]  edge_index: [G,2,E] int  edge_attr: [G,E,edge_dim]
        edge_weight: [G,E]  ->  [G,N,2]  (each graph normalized independently)."""
        g, n, f_raw = x.shape
        e, ed_raw = edge_attr.shape[1], edge_attr.shape[2]

        # Pad node-feature (contraction) axis to a multiple of 8 only.
        x_p = jnp.pad(x.astype(jnp.float32), ((0, 0), (0, 0), (0, d_in - f_raw)))

        # Per-edge slab 1 (matmul orientation): edge_attr | src index (as f32).
        eattr_src = jnp.zeros((g, e, d_e), jnp.float32)
        eattr_src = eattr_src.at[:, :, :ed_raw].set(edge_attr.astype(jnp.float32))
        eattr_src = eattr_src.at[:, :, col_src].set(edge_index[:, 0, :].astype(jnp.float32))
        # Per-edge slab 2 (row orientation): dst index, edge_weight.
        dst_ew = jnp.zeros((g, 8, e), jnp.float32)
        dst_ew = dst_ew.at[:, 0, :].set(edge_index[:, 1, :].astype(jnp.float32))
        dst_ew = dst_ew.at[:, 1, :].set(edge_weight.astype(jnp.float32))

        flops, transc = _estimate_cost(layout, g, n, e)
        bytes_accessed = 4 * (x_p.size + eattr_src.size + dst_ew.size
                              + w_slab.size + b_slab.size + g * n * d_out)

        out = pl.pallas_call(
            functools.partial(_gin_fused_kernel, dims=layout),
            out_shape=jax.ShapeDtypeStruct((g, n, d_out), jnp.float32),
            grid=(g,),
            in_specs=[
                pl.BlockSpec((1, n, d_in), lambda i: (i, 0, 0)),
                pl.BlockSpec((1, e, d_e), lambda i: (i, 0, 0)),
                pl.BlockSpec((1, 8, e), lambda i: (i, 0, 0)),
                # Parameter slabs: constant index_map -> DMA'd once, stay resident.
                pl.BlockSpec(w_slab.shape, lambda i: (0, 0)),
                pl.BlockSpec(b_slab.shape, lambda i: (0, 0)),
            ],
            out_specs=pl.BlockSpec((1, n, d_out), lambda i: (i, 0, 0)),
            compiler_params=pltpu.CompilerParams(
                dimension_semantics=("parallel",)),   # graphs are independent (v7x: 2 TCs)
            cost_estimate=pl.CostEstimate(flops=flops, transcendentals=transc,
                                          bytes_accessed=int(bytes_accessed)),
        )(x_p, eattr_src, dst_ew, w_slab, b_slab)

        return out[:, :, :2]      # padded output channels are exactly 0

    return forward


# --------------------------------------------------------------------------
# Pure-JAX reference (single graph) for validation.
# --------------------------------------------------------------------------
def _reference_forward(x, edge_index, edge_attr, edge_weight, layer1, layer2):
    hi = jax.lax.Precision.HIGHEST

    def gin_layer(h, params):
        wenc, benc, w1, b1, w2, b2, gamma, beta = params
        emb = jnp.dot(edge_attr, wenc, precision=hi) + benc
        msg = jnp.maximum(h[edge_index[0]] + emb, 0.0) * edge_weight[:, None]
        agg = jnp.zeros_like(h).at[edge_index[1]].add(msg)
        z = h + agg
        z = jnp.maximum(jnp.dot(z, w1, precision=hi) + b1, 0.0)
        z = jnp.dot(z, w2, precision=hi) + b2
        a = jnp.maximum(z, 0.0)
        mu = a.mean(0, keepdims=True)
        var = ((a - mu) ** 2).mean(0, keepdims=True)
        return (a - mu) * jax.lax.rsqrt(var + BN_EPS) * gamma + beta

    h1 = gin_layer(x, layer1)
    return gin_layer(h1, layer2)


if __name__ == "__main__":
    G, N_NODES, N_EDGES = 4, 16, 32
    INPUT_DIM, HIDDEN_DIM, EDGE_DIM = 8, 32, 4

    key = jax.random.PRNGKey(0)
    kx, ke, ka, kw, kp = jax.random.split(key, 5)

    x = jax.random.normal(kx, (G, N_NODES, INPUT_DIM), jnp.float32)
    edge_index = jax.random.randint(ke, (G, 2, N_EDGES), 0, N_NODES, jnp.int32)
    edge_attr = jax.random.normal(ka, (G, N_EDGES, EDGE_DIM), jnp.float32)
    edge_weight = jax.random.uniform(kw, (G, N_EDGES), jnp.float32)

    layer1, layer2 = init_params(kp, INPUT_DIM, HIDDEN_DIM, EDGE_DIM)
    w_slab, b_slab, layout = pack_params(layer1, layer2, INPUT_DIM, HIDDEN_DIM, EDGE_DIM)

    forward = make_forward(layout)
    out = jax.block_until_ready(
        forward(x, edge_index, edge_attr, edge_weight, w_slab, b_slab))

    assert out.shape == (G, N_NODES, 2) and out.dtype == jnp.float32
    assert bool(jnp.all(jnp.isfinite(out)))

    ref = jnp.stack([_reference_forward(x[i], edge_index[i], edge_attr[i],
                                        edge_weight[i], layer1, layer2)
                     for i in range(G)])
    max_err = float(jnp.max(jnp.abs(out - ref)))
    assert jnp.allclose(out, ref, atol=2e-3, rtol=2e-3), max_err

    print("KERNEL_OK")
</pallas_src>

<mosaic_0001>
module attributes {stable_mosaic.version = 11 : i64} {
  func.func @_gin_fused_kernel(%arg0: i32, %arg1: memref<1x16x8xf32, #tpu.memory_space<vmem>>, %arg2: memref<1x32x8xf32, #tpu.memory_space<vmem>>, %arg3: memref<1x8x32xf32, #tpu.memory_space<vmem>>, %arg4: memref<184x64xf32, #tpu.memory_space<vmem>>, %arg5: memref<16x64xf32, #tpu.memory_space<vmem>>, %arg6: memref<1x16x8xf32, #tpu.memory_space<vmem>>) attributes {dimension_semantics = [#tpu.dimension_semantics<parallel>], iteration_bounds = array<i64: 4>, scalar_prefetch = 0 : i64, scratch_operands = 0 : i64, tpu.core_type = #tpu.core_type<tc>, window_params = [{transform_indices = @transform_0, window_bounds = array<i64: 1, 16, 8>}, {transform_indices = @transform_1, window_bounds = array<i64: 1, 32, 8>}, {transform_indices = @transform_2, window_bounds = array<i64: 1, 8, 32>}, {pipeline_mode = #tpu.pipeline_mode<synchronous>, transform_indices = @transform_3, window_bounds = array<i64: 184, 64>}, {pipeline_mode = #tpu.pipeline_mode<synchronous>, transform_indices = @transform_4, window_bounds = array<i64: 16, 64>}, {transform_indices = @transform_5, window_bounds = array<i64: 1, 16, 8>}]} {
    %c0 = arith.constant 0 : index
    %c0_0 = arith.constant 0 : index
    %c0_1 = arith.constant 0 : index
    %0 = vector.load %arg1[%c0, %c0_0, %c0_1] : memref<1x16x8xf32, #tpu.memory_space<vmem>>, vector<1x16x8xf32>
    %1 = vector.shape_cast %0 : vector<1x16x8xf32> to vector<16x8xf32>
    %c0_2 = arith.constant 0 : index
    %c0_3 = arith.constant 0 : index
    %c0_4 = arith.constant 0 : index
    %2 = vector.load %arg2[%c0_2, %c0_3, %c0_4] : memref<1x32x8xf32, #tpu.memory_space<vmem>>, vector<1x32x8xf32>
    %3 = vector.shape_cast %2 : vector<1x32x8xf32> to vector<32x8xf32>
    %c0_5 = arith.constant 0 : index
    %c0_6 = arith.constant 0 : index
    %c0_7 = arith.constant 0 : index
    %4 = vector.load %arg3[%c0_5, %c0_6, %c0_7] : memref<1x8x32xf32, #tpu.memory_space<vmem>>, vector<1x8x32xf32>
    %5 = vector.shape_cast %4 : vector<1x8x32xf32> to vector<8x32xf32>
    %6 = vector.extract_strided_slice %3 {offsets = [0, 4], sizes = [32, 1], strides = [1, 1]} : vector<32x8xf32> to vector<32x1xf32>
    %7 = arith.fptosi %6 : vector<32x1xf32> to vector<32x1xi32>
    %8 = tpu.iota {dimensions = array<i32: 1>} : vector<32x16xi32>
    %9 = vector.broadcast %7 : vector<32x1xi32> to vector<32x16xi32>
    %10 = arith.cmpi eq, %9, %8 : vector<32x16xi32>
    %11 = arith.extui %10 : vector<32x16xi1> to vector<32x16xi32>
    %12 = arith.sitofp %11 : vector<32x16xi32> to vector<32x16xf32>
    %13 = vector.extract_strided_slice %5 {offsets = [0, 0], sizes = [1, 32], strides = [1, 1]} : vector<8x32xf32> to vector<1x32xf32>
    %14 = arith.fptosi %13 : vector<1x32xf32> to vector<1x32xi32>
    %15 = vector.extract_strided_slice %5 {offsets = [1, 0], sizes = [1, 32], strides = [1, 1]} : vector<8x32xf32> to vector<1x32xf32>
    %16 = tpu.iota {dimensions = array<i32: 0>} : vector<16x32xi32>
    %17 = vector.broadcast %14 : vector<1x32xi32> to vector<16x32xi32>
    %18 = arith.cmpi eq, %17, %16 : vector<16x32xi32>
    %19 = arith.extui %18 : vector<16x32xi1> to vector<16x32xi32>
    %20 = arith.sitofp %19 : vector<16x32xi32> to vector<16x32xf32>
    %21 = vector.broadcast %15 : vector<1x32xf32> to vector<16x32xf32>
    %22 = arith.mulf %20, %21 : vector<16x32xf32>
    %c0_8 = arith.constant 0 : index
    %c0_9 = arith.constant 0 : index
    %23 = vector.load %arg4[%c0_8, %c0_9] : memref<184x64xf32, #tpu.memory_space<vmem>>, vector<8x8xf32>
    %c8 = arith.constant 8 : index
    %c0_10 = arith.constant 0 : index
    %24 = vector.load %arg4[%c8, %c0_10] : memref<184x64xf32, #tpu.memory_space<vmem>>, vector<8x64xf32>
    %c16 = arith.constant 16 : index
    %c0_11 = arith.constant 0 : index
    %25 = vector.load %arg4[%c16, %c0_11] : memref<184x64xf32, #tpu.memory_space<vmem>>, vector<64x32xf32>
    %c0_12 = arith.constant 0 : index
    %c0_13 = arith.constant 0 : index
    %26 = vector.load %arg5[%c0_12, %c0_13] : memref<16x64xf32, #tpu.memory_space<vmem>>, vector<1x8xf32>
    %c1 = arith.constant 1 : index
    %c0_14 = arith.constant 0 : index
    %27 = vector.load %arg5[%c1, %c0_14] : memref<16x64xf32, #tpu.memory_space<vmem>>, vector<1x64xf32>
    %c2 = arith.constant 2 : index
    %c0_15 = arith.constant 0 : index
    %28 = vector.load %arg5[%c2, %c0_15] : memref<16x64xf32, #tpu.memory_space<vmem>>, vector<1x32xf32>
    %c3 = arith.constant 3 : index
    %c0_16 = arith.constant 0 : index
    %29 = vector.load %arg5[%c3, %c0_16] : memref<16x64xf32, #tpu.memory_space<vmem>>, vector<1x32xf32>
    %c4 = arith.constant 4 : index
    %c0_17 = arith.constant 0 : index
    %30 = vector.load %arg5[%c4, %c0_17] : memref<16x64xf32, #tpu.memory_space<vmem>>, vector<1x32xf32>
    %cst = arith.constant dense<0.000000e+00> : vector<32x8xf32>
    %31 = tpu.matmul %3, %23, %cst {dimension_numbers = #tpu.dot_dimension_numbers<[1], [0], [0], [1], [0, 0, 1, 1], [], []>} : vector<32x8xf32>, vector<8x8xf32>, vector<32x8xf32> -> vector<32x8xf32>
    %32 = vector.broadcast %26 : vector<1x8xf32> to vector<32x8xf32>
    %33 = arith.addf %31, %32 : vector<32x8xf32>
    %cst_18 = arith.constant dense<0.000000e+00> : vector<32x8xf32>
    %34 = tpu.matmul %12, %1, %cst_18 {dimension_numbers = #tpu.dot_dimension_numbers<[1], [0], [0], [1], [0, 0, 1, 1], [], []>} : vector<32x16xf32>, vector<16x8xf32>, vector<32x8xf32> -> vector<32x8xf32>
    %35 = arith.addf %34, %33 : vector<32x8xf32>
    %cst_19 = arith.constant 0.000000e+00 : f32
    %36 = vector.broadcast %cst_19 : f32 to vector<32x8xf32>
    %37 = arith.maximumf %35, %36 : vector<32x8xf32>
    %cst_20 = arith.constant dense<0.000000e+00> : vector<16x8xf32>
    %38 = tpu.matmul %22, %37, %cst_20 {dimension_numbers = #tpu.dot_dimension_numbers<[1], [0], [0], [1], [0, 0, 1, 1], [], []>} : vector<16x32xf32>, vector<32x8xf32>, vector<16x8xf32> -> vector<16x8xf32>
    %39 = arith.addf %1, %38 : vector<16x8xf32>
    %cst_21 = arith.constant dense<0.000000e+00> : vector<16x64xf32>
    %40 = tpu.matmul %39, %24, %cst_21 {dimension_numbers = #tpu.dot_dimension_numbers<[1], [0], [0], [1], [0, 0, 1, 1], [], []>} : vector<16x8xf32>, vector<8x64xf32>, vector<16x64xf32> -> vector<16x64xf32>
    %41 = vector.broadcast %27 : vector<1x64xf32> to vector<16x64xf32>
    %42 = arith.addf %40, %41 : vector<16x64xf32>
    %cst_22 = arith.constant 0.000000e+00 : f32
    %43 = vector.broadcast %cst_22 : f32 to vector<16x64xf32>
    %44 = arith.maximumf %42, %43 : vector<16x64xf32>
    %cst_23 = arith.constant dense<0.000000e+00> : vector<16x32xf32>
    %45 = tpu.matmul %44, %25, %cst_23 {dimension_numbers = #tpu.dot_dimension_numbers<[1], [0], [0], [1], [0, 0, 1, 1], [], []>} : vector<16x64xf32>, vector<64x32xf32>, vector<16x32xf32> -> vector<16x32xf32>
    %46 = vector.broadcast %28 : vector<1x32xf32> to vector<16x32xf32>
    %47 = arith.addf %45, %46 : vector<16x32xf32>
    %cst_24 = arith.constant 0.000000e+00 : f32
    %48 = vector.broadcast %cst_24 : f32 to vector<16x32xf32>
    %49 = arith.maximumf %47, %48 : vector<16x32xf32>
    %cst_25 = arith.constant dense<0.000000e+00> : vector<32xf32>
    %50 = vector.multi_reduction <add>, %49, %cst_25 [0] : vector<16x32xf32> to vector<32xf32>
    %51 = vector.shape_cast %50 : vector<32xf32> to vector<1x32xf32>
    %cst_26 = arith.constant 1.600000e+01 : f32
    %52 = vector.broadcast %cst_26 : f32 to vector<1x32xf32>
    %53 = arith.divf %51, %52 : vector<1x32xf32>
    %54 = vector.broadcast %53 : vector<1x32xf32> to vector<16x32xf32>
    %55 = arith.subf %49, %54 : vector<16x32xf32>
    %56 = arith.mulf %55, %55 : vector<16x32xf32>
    %cst_27 = arith.constant dense<0.000000e+00> : vector<32xf32>
    %57 = vector.multi_reduction <add>, %56, %cst_27 [0] : vector<16x32xf32> to vector<32xf32>
    %58 = vector.shape_cast %57 : vector<32xf32> to vector<1x32xf32>
    %cst_28 = arith.constant 1.600000e+01 : f32
    %59 = vector.broadcast %cst_28 : f32 to vector<1x32xf32>
    %60 = arith.divf %58, %59 : vector<1x32xf32>
    %61 = vector.broadcast %53 : vector<1x32xf32> to vector<16x32xf32>
    %62 = arith.subf %49, %61 : vector<16x32xf32>
    %cst_29 = arith.constant 9.99999974E-6 : f32
    %63 = vector.broadcast %cst_29 : f32 to vector<1x32xf32>
    %64 = arith.addf %60, %63 : vector<1x32xf32>
    %65 = math.rsqrt %64 : vector<1x32xf32>
    %66 = vector.broadcast %65 : vector<1x32xf32> to vector<16x32xf32>
    %67 = arith.mulf %62, %66 : vector<16x32xf32>
    %68 = vector.broadcast %29 : vector<1x32xf32> to vector<16x32xf32>
    %69 = arith.mulf %67, %68 : vector<16x32xf32>
    %70 = vector.broadcast %30 : vector<1x32xf32> to vector<16x32xf32>
    %71 = arith.addf %69, %70 : vector<16x32xf32>
    %c80 = arith.constant 80 : index
    %c0_30 = arith.constant 0 : index
    %72 = vector.load %arg4[%c80, %c0_30] : memref<184x64xf32, #tpu.memory_space<vmem>>, vector<8x32xf32>
    %c88 = arith.constant 88 : index
    %c0_31 = arith.constant 0 : index
    %73 = vector.load %arg4[%c88, %c0_31] : memref<184x64xf32, #tpu.memory_space<vmem>>, vector<32x64xf32>
    %c120 = arith.constant 120 : index
    %c0_32 = arith.constant 0 : index
    %74 = vector.load %arg4[%c120, %c0_32] : memref<184x64xf32, #tpu.memory_space<vmem>>, vector<64x8xf32>
    %c5 = arith.constant 5 : index
    %c0_33 = arith.constant 0 : index
    %75 = vector.load %arg5[%c5, %c0_33] : memref<16x64xf32, #tpu.memory_space<vmem>>, vector<1x32xf32>
    %c6 = arith.constant 6 : index
    %c0_34 = arith.constant 0 : index
    %76 = vector.load %arg5[%c6, %c0_34] : memref<16x64xf32, #tpu.memory_space<vmem>>, vector<1x64xf32>
    %c7 = arith.constant 7 : index
    %c0_35 = arith.constant 0 : index
    %77 = vector.load %arg5[%c7, %c0_35] : memref<16x64xf32, #tpu.memory_space<vmem>>, vector<1x8xf32>
    %c8_36 = arith.constant 8 : index
    %c0_37 = arith.constant 0 : index
    %78 = vector.load %arg5[%c8_36, %c0_37] : memref<16x64xf32, #tpu.memory_space<vmem>>, vector<1x8xf32>
    %c9 = arith.constant 9 : index
    %c0_38 = arith.constant 0 : index
    %79 = vector.load %arg5[%c9, %c0_38] : memref<16x64xf32, #tpu.memory_space<vmem>>, vector<1x8xf32>
    %cst_39 = arith.constant dense<0.000000e+00> : vector<32x32xf32>
    %80 = tpu.matmul %3, %72, %cst_39 {dimension_numbers = #tpu.dot_dimension_numbers<[1], [0], [0], [1], [0, 0, 1, 1], [], []>} : vector<32x8xf32>, vector<8x32xf32>, vector<32x32xf32> -> vector<32x32xf32>
    %81 = vector.broadcast %75 : vector<1x32xf32> to vector<32x32xf32>
    %82 = arith.addf %80, %81 : vector<32x32xf32>
    %cst_40 = arith.constant dense<0.000000e+00> : vector<32x32xf32>
    %83 = tpu.matmul %12, %71, %cst_40 {dimension_numbers = #tpu.dot_dimension_numbers<[1], [0], [0], [1], [0, 0, 1, 1], [], []>} : vector<32x16xf32>, vector<16x32xf32>, vector<32x32xf32> -> vector<32x32xf32>
    %84 = arith.addf %83, %82 : vector<32x32xf32>
    %cst_41 = arith.constant 0.000000e+00 : f32
    %85 = vector.broadcast %cst_41 : f32 to vector<32x32xf32>
    %86 = arith.maximumf %84, %85 : vector<32x32xf32>
    %cst_42 = arith.constant dense<0.000000e+00> : vector<16x32xf32>
    %87 = tpu.matmul %22, %86, %cst_42 {dimension_numbers = #tpu.dot_dimension_numbers<[1], [0], [0], [1], [0, 0, 1, 1], [], []>} : vector<16x32xf32>, vector<32x32xf32>, vector<16x32xf32> -> vector<16x32xf32>
    %88 = arith.addf %71, %87 : vector<16x32xf32>
    %cst_43 = arith.constant dense<0.000000e+00> : vector<16x64xf32>
    %89 = tpu.matmul %88, %73, %cst_43 {dimension_numbers = #tpu.dot_dimension_numbers<[1], [0], [0], [1], [0, 0, 1, 1], [], []>} : vector<16x32xf32>, vector<32x64xf32>, vector<16x64xf32> -> vector<16x64xf32>
    %90 = vector.broadcast %76 : vector<1x64xf32> to vector<16x64xf32>
    %91 = arith.addf %89, %90 : vector<16x64xf32>
    %cst_44 = arith.constant 0.000000e+00 : f32
    %92 = vector.broadcast %cst_44 : f32 to vector<16x64xf32>
    %93 = arith.maximumf %91, %92 : vector<16x64xf32>
    %cst_45 = arith.constant dense<0.000000e+00> : vector<16x8xf32>
    %94 = tpu.matmul %93, %74, %cst_45 {dimension_numbers = #tpu.dot_dimension_numbers<[1], [0], [0], [1], [0, 0, 1, 1], [], []>} : vector<16x64xf32>, vector<64x8xf32>, vector<16x8xf32> -> vector<16x8xf32>
    %95 = vector.broadcast %77 : vector<1x8xf32> to vector<16x8xf32>
    %96 = arith.addf %94, %95 : vector<16x8xf32>
    %cst_46 = arith.constant 0.000000e+00 : f32
    %97 = vector.broadcast %cst_46 : f32 to vector<16x8xf32>
    %98 = arith.maximumf %96, %97 : vector<16x8xf32>
    %cst_47 = arith.constant dense<0.000000e+00> : vector<8xf32>
    %99 = vector.multi_reduction <add>, %98, %cst_47 [0] : vector<16x8xf32> to vector<8xf32>
    %100 = vector.shape_cast %99 : vector<8xf32> to vector<1x8xf32>
    %cst_48 = arith.constant 1.600000e+01 : f32
    %101 = vector.broadcast %cst_48 : f32 to vector<1x8xf32>
    %102 = arith.divf %100, %101 : vector<1x8xf32>
    %103 = vector.broadcast %102 : vector<1x8xf32> to vector<16x8xf32>
    %104 = arith.subf %98, %103 : vector<16x8xf32>
    %105 = arith.mulf %104, %104 : vector<16x8xf32>
    %cst_49 = arith.constant dense<0.000000e+00> : vector<8xf32>
    %106 = vector.multi_reduction <add>, %105, %cst_49 [0] : vector<16x8xf32> to vector<8xf32>
    %107 = vector.shape_cast %106 : vector<8xf32> to vector<1x8xf32>
    %cst_50 = arith.constant 1.600000e+01 : f32
    %108 = vector.broadcast %cst_50 : f32 to vector<1x8xf32>
    %109 = arith.divf %107, %108 : vector<1x8xf32>
    %110 = vector.broadcast %102 : vector<1x8xf32> to vector<16x8xf32>
    %111 = arith.subf %98, %110 : vector<16x8xf32>
    %cst_51 = arith.constant 9.99999974E-6 : f32
    %112 = vector.broadcast %cst_51 : f32 to vector<1x8xf32>
    %113 = arith.addf %109, %112 : vector<1x8xf32>
    %114 = math.rsqrt %113 : vector<1x8xf32>
    %115 = vector.broadcast %114 : vector<1x8xf32> to vector<16x8xf32>
    %116 = arith.mulf %111, %115 : vector<16x8xf32>
    %117 = vector.broadcast %78 : vector<1x8xf32> to vector<16x8xf32>
    %118 = arith.mulf %116, %117 : vector<16x8xf32>
    %119 = vector.broadcast %79 : vector<1x8xf32> to vector<16x8xf32>
    %120 = arith.addf %118, %119 : vector<16x8xf32>
    %c0_52 = arith.constant 0 : index
    %c0_53 = arith.constant 0 : index
    %c0_54 = arith.constant 0 : index
    %121 = vector.load %arg6[%c0_52, %c0_53, %c0_54] : memref<1x16x8xf32, #tpu.memory_space<vmem>>, vector<1x16x8xf32>
    %122 = vector.shape_cast %121 : vector<1x16x8xf32> to vector<16x8xf32>
    %123 = vector.shape_cast %120 : vector<16x8xf32> to vector<1x16x8xf32>
    tpu.vector_store %arg6[%c0_52, %c0_53, %c0_54], %123 {strides = array<i32>} : memref<1x16x8xf32, #tpu.memory_space<vmem>>, vector<1x16x8xf32>,
    return
  }
  func.func @transform_0(%arg0: i32) -> (i32, i32, i32) {
    %c0_i32 = arith.constant 0 : i32
    %c0_i32_0 = arith.constant 0 : i32
    %c0_i32_1 = arith.constant 0 : i32
    return %arg0, %c0_i32, %c0_i32_0 : i32, i32, i32
  }
  func.func @transform_1(%arg0: i32) -> (i32, i32, i32) {
    %c0_i32 = arith.constant 0 : i32
    %c0_i32_0 = arith.constant 0 : i32
    %c0_i32_1 = arith.constant 0 : i32
    return %arg0, %c0_i32, %c0_i32_0 : i32, i32, i32
  }
  func.func @transform_2(%arg0: i32) -> (i32, i32, i32) {
    %c0_i32 = arith.constant 0 : i32
    %c0_i32_0 = arith.constant 0 : i32
    %c0_i32_1 = arith.constant 0 : i32
    return %arg0, %c0_i32, %c0_i32_0 : i32, i32, i32
  }
  func.func @transform_3(%arg0: i32) -> (i32, i32) {
    %c0_i32 = arith.constant 0 : i32
    %c0_i32_0 = arith.constant 0 : i32
    %c0_i32_1 = arith.constant 0 : i32
    return %c0_i32, %c0_i32_0 : i32, i32
  }
  func.func @transform_4(%arg0: i32) -> (i32, i32) {
    %c0_i32 = arith.constant 0 : i32
    %c0_i32_0 = arith.constant 0 : i32
    %c0_i32_1 = arith.constant 0 : i32
    return %c0_i32, %c0_i32_0 : i32, i32
  }
  func.func @transform_5(%arg0: i32) -> (i32, i32, i32) {
    %c0_i32 = arith.constant 0 : i32
    %c0_i32_0 = arith.constant 0 : i32
    %c0_i32_1 = arith.constant 0 : i32
    return %arg0, %c0_i32, %c0_i32_0 : i32, i32, i32
  }
}

</mosaic_0001>

<llo_original>
// kernel: forward.1
$region0: #{forward.1}
  #allocation0 [shape = 'u32[]', space=smem, size = 0x4, offset = 0x4, fixed_abs, tag = 'smem constant byte address 0x4 - core index']
  #allocation1 [shape = 'u32[144,128]{1,0:T(1,128)}', space=vmem, size = 0x12000, scoped, tag = 'internal scratch']
  %s0 = inlined_call_operand.vmem [shape: f32[4,16,8], index: 0, kind: input, shape index: {}]
  %s1 = inlined_call_operand.vmem [shape: f32[4,32,8], index: 1, kind: input, shape index: {}]
  %s2 = inlined_call_operand.vmem [shape: f32[4,8,32], index: 2, kind: input, shape index: {}]
  %s3 = inlined_call_operand.vmem [shape: f32[184,64], index: 3, kind: input, shape index: {}]
  %s4 = inlined_call_operand.vmem [shape: f32[16,64], index: 4, kind: input, shape index: {}]
  %s5 = inlined_call_operand.vmem [shape: f32[4,16,8], index: 5, kind: output, shape index: {}]
  %s6 = sld [smem:[#allocation0]]
  $region53: #{forward.1} parent=0
    _
  %s8 = ssub.s32 1, %s6
  %s9 = scalar_select 0, %s8, %s6
  loop: start=0, step=1, limit=6
  $region2: #{forward.1} parent=0 // loop_pre_header
    _
  $region3: #{forward.1} parent=0 // loop_header
    %s11 = sphi 0, %s15
    %p12 = scmp.ge.s32.totalorder %s11, 6
    %s21 = sphi 0, %s23
    %s24 = sphi 0, %s21
    %s25 = sphi 0, %s24
    %s41 = sphi 0, %s25
    %s47 = sphi 0, %s49
    %s50 = sphi 0, %s47
    %s51 = sphi 0, %s50
    %s67 = sphi 0, %s51
    %s73 = sphi 0, %s75
    %s76 = sphi 0, %s73
    %s77 = sphi 0, %s76
    %s93 = sphi 0, %s77
    %s97 = sphi 0, %s97
    %s99 = sphi 0, %s97
    %s100 = sphi 0, %s99
    %s114 = sphi 0, %s100
    %s118 = sphi 0, %s118
    %s120 = sphi 0, %s118
    %s121 = sphi 0, %s120
    %s135 = sphi 0, %s121
    %s141 = sphi 0, %s143
    %s144 = sphi 0, %s141
    %s145 = sphi 0, %s144
    %s161 = sphi 0, %s145
  $region4: #{forward.1} parent=0 // loop_header_branch
    %14 = sbr.rel (%p12) target = $region8
  $region5: #{forward.1} parent=0 // loop_body
    %s16 = ssub.s32 %s11, 1
    %s17 = ssub.s32 %s11, 2
    %s18 = sadd.s32 %s11, 1
    %s19 = ssub.s32 %s11, %s18
    %p20 = scmp.eq.s32.totalorder %s19, 0
    %s22 = sadd.s32 %s21, 1
    %s23 = scalar_select %p20, %s21, %s22
    %p26 = pneg %p20
    %p27 = scmp.eq.s32.totalorder %s11, 3
    %p28 = por %p26, %p27
    %p29 = scmp.ne.s32.totalorder %s21, %s24
    %p30 = scmp.eq.s32.totalorder %s11, 0
    %p31 = por %p29, %p30
    %p32 = scmp.ne.s32.totalorder %s21, %s24
    %p33 = scmp.eq.s32.totalorder %s16, 3
    %p34 = por %p32, %p33
    %p35 = scmp.ne.s32.totalorder %s24, %s25
    %p36 = scmp.eq.s32.totalorder %s16, 0
    %p37 = por %p35, %p36
    %p38 = scmp.ne.s32.totalorder %s24, %s25
    %p39 = scmp.eq.s32.totalorder %s17, 3
    %p40 = por %p38, %p39
    %p42 = scmp.ne.s32.totalorder %s25, %s41
    %p43 = scmp.eq.s32.totalorder %s17, 0
    %p44 = por %p42, %p43
    %s45 = ssub.s32 %s11, %s18
    %p46 = scmp.eq.s32.totalorder %s45, 0
    %s48 = sadd.s32 %s47, 1
    %s49 = scalar_select %p46, %s47, %s48
    %p52 = pneg %p46
    %p53 = scmp.eq.s32.totalorder %s11, 3
    %p54 = por %p52, %p53
    %p55 = scmp.ne.s32.totalorder %s47, %s50
    %p56 = scmp.eq.s32.totalorder %s11, 0
    %p57 = por %p55, %p56
    %p58 = scmp.ne.s32.totalorder %s47, %s50
    %p59 = scmp.eq.s32.totalorder %s16, 3
    %p60 = por %p58, %p59
    %p61 = scmp.ne.s32.totalorder %s50, %s51
    %p62 = scmp.eq.s32.totalorder %s16, 0
    %p63 = por %p61, %p62
    %p64 = scmp.ne.s32.totalorder %s50, %s51
    %p65 = scmp.eq.s32.totalorder %s17, 3
    %p66 = por %p64, %p65
    %p68 = scmp.ne.s32.totalorder %s51, %s67
    %p69 = scmp.eq.s32.totalorder %s17, 0
    %p70 = por %p68, %p69
    %s71 = ssub.s32 %s11, %s18
    %p72 = scmp.eq.s32.totalorder %s71, 0
    %s74 = sadd.s32 %s73, 1
    %s75 = scalar_select %p72, %s73, %s74
    %p78 = pneg %p72
    %p79 = scmp.eq.s32.totalorder %s11, 3
    %p80 = por %p78, %p79
    %p81 = scmp.ne.s32.totalorder %s73, %s76
    %p82 = scmp.eq.s32.totalorder %s11, 0
    %p83 = por %p81, %p82
    %p84 = scmp.ne.s32.totalorder %s73, %s76
    %p85 = scmp.eq.s32.totalorder %s16, 3
    %p86 = por %p84, %p85
    %p87 = scmp.ne.s32.totalorder %s76, %s77
    %p88 = scmp.eq.s32.totalorder %s16, 0
    %p89 = por %p87, %p88
    %p90 = scmp.ne.s32.totalorder %s76, %s77
    %p91 = scmp.eq.s32.totalorder %s17, 3
    %p92 = por %p90, %p91
    %p94 = scmp.ne.s32.totalorder %s77, %s93
    %p95 = scmp.eq.s32.totalorder %s17, 0
    %p96 = por %p94, %p95
    %s98 = sadd.s32 %s97, 1
    %p101 = scmp.eq.s32.totalorder %s11, 3
    %p102 = scmp.ne.s32.totalorder %s97, %s99
    %p103 = scmp.eq.s32.totalorder %s11, 0
    %p104 = por %p102, %p103
    %p105 = scmp.ne.s32.totalorder %s97, %s99
    %p106 = scmp.eq.s32.totalorder %s16, 3
    %p107 = por %p105, %p106
    %p108 = scmp.ne.s32.totalorder %s99, %s100
    %p109 = scmp.eq.s32.totalorder %s16, 0
    %p110 = por %p108, %p109
    %p111 = scmp.ne.s32.totalorder %s99, %s100
    %p112 = scmp.eq.s32.totalorder %s17, 3
    %p113 = por %p111, %p112
    %p115 = scmp.ne.s32.totalorder %s100, %s114
    %p116 = scmp.eq.s32.totalorder %s17, 0
    %p117 = por %p115, %p116
    %s119 = sadd.s32 %s118, 1
    %p122 = scmp.eq.s32.totalorder %s11, 3
    %p123 = scmp.ne.s32.totalorder %s118, %s120
    %p124 = scmp.eq.s32.totalorder %s11, 0
    %p125 = por %p123, %p124
    %p126 = scmp.ne.s32.totalorder %s118, %s120
    %p127 = scmp.eq.s32.totalorder %s16, 3
    %p128 = por %p126, %p127
    %p129 = scmp.ne.s32.totalorder %s120, %s121
    %p130 = scmp.eq.s32.totalorder %s16, 0
    %p131 = por %p129, %p130
    %p132 = scmp.ne.s32.totalorder %s120, %s121
    %p133 = scmp.eq.s32.totalorder %s17, 3
    %p134 = por %p132, %p133
    %p136 = scmp.ne.s32.totalorder %s121, %s135
    %p137 = scmp.eq.s32.totalorder %s17, 0
    %p138 = por %p136, %p137
    %s139 = ssub.s32 %s11, %s18
    %p140 = scmp.eq.s32.totalorder %s139, 0
    %s142 = sadd.s32 %s141, 1
    %s143 = scalar_select %p140, %s141, %s142
    %p146 = pneg %p140
    %p147 = scmp.eq.s32.totalorder %s11, 3
    %p148 = por %p146, %p147
    %p149 = scmp.ne.s32.totalorder %s141, %s144
    %p150 = scmp.eq.s32.totalorder %s11, 0
    %p151 = por %p149, %p150
    %p152 = scmp.ne.s32.totalorder %s141, %s144
    %p153 = scmp.eq.s32.totalorder %s16, 3
    %p154 = por %p152, %p153
    %p155 = scmp.ne.s32.totalorder %s144, %s145
    %p156 = scmp.eq.s32.totalorder %s16, 0
    %p157 = por %p155, %p156
    %p158 = scmp.ne.s32.totalorder %s144, %s145
    %p159 = scmp.eq.s32.totalorder %s17, 3
    %p160 = por %p158, %p159
    %p162 = scmp.ne.s32.totalorder %s145, %s161
    %p163 = scmp.eq.s32.totalorder %s17, 0
    %p164 = por %p162, %p163
    %p165 = scmp.le.s32.totalorder 1, %s11
    %p166 = scmp.lt.s32.totalorder %s11, 5
    %p167 = pnand %p165, %p166
    %p168 = pneg %p167
    // Predicated region
    $region9: #{forward.1} parent=5 // pred_check
      _
    $region10: #{forward.1} parent=5 // pred_check_branch
      %170 = sbr.rel (%p167) target = $region12
    $region11: #{forward.1} parent=5 // pred_region
      %s171 = ssub.s32 %s11, 1
      // Predicated region
      $region13: #{forward.1} parent=11 // pred_check
        %p172 = pneg %p110
      $region14: #{forward.1} parent=11 // pred_check_branch
        %174 = sbr.rel (%p172) target = $region16
      $region15: #{forward.1} parent=11 // pred_region
        _
      $region16: #{forward.1} parent=11 // pred_fallthru
        _
      // Predicated region
      $region17: #{forward.1} parent=11 // pred_check
        %p175 = pneg %p131
      $region18: #{forward.1} parent=11 // pred_check_branch
        %177 = sbr.rel (%p175) target = $region20
      $region19: #{forward.1} parent=11 // pred_region
        _
      $region20: #{forward.1} parent=11 // pred_fallthru
        _
    $region12: #{forward.1} parent=5 // pred_fallthru
      _
    %p178 = scmp.lt.s32.totalorder %s11, 4
    // Predicated region
    $region21: #{forward.1} parent=5 // pred_check
      %p179 = pneg %p178
    $region22: #{forward.1} parent=5 // pred_check_branch
      %181 = sbr.rel (%p179) target = $region24
    $region23: #{forward.1} parent=5 // pred_region
      // Predicated region
      $region25: #{forward.1} parent=23 // pred_check
        %p182 = pneg %p31
      $region26: #{forward.1} parent=23 // pred_check_branch
        %184 = sbr.rel (%p182) target = $region28
      $region27: #{forward.1} parent=23 // pred_region
        %p185 = scmp.lt.s32.totalorder %s11, 3
        %s186 = scalar_select %p185, %s11, 3
        %s187 = smul.addr %s186, 2
        %s188 = smul.addr %s187, 8
        %s189 = scalar_lea.vmem %s0, %s188
      $region28: #{forward.1} parent=23 // pred_fallthru
        _
      // Predicated region
      $region29: #{forward.1} parent=23 // pred_check
        %p190 = pneg %p57
      $region30: #{forward.1} parent=23 // pred_check_branch
        %192 = sbr.rel (%p190) target = $region32
      $region31: #{forward.1} parent=23 // pred_region
        %p193 = scmp.lt.s32.totalorder %s11, 3
        %s194 = scalar_select %p193, %s11, 3
        %s195 = smul.addr %s194, 4
        %s196 = smul.addr %s195, 8
        %s197 = scalar_lea.vmem %s1, %s196
      $region32: #{forward.1} parent=23 // pred_fallthru
        _
      // Predicated region
      $region33: #{forward.1} parent=23 // pred_check
        %p198 = pneg %p83
      $region34: #{forward.1} parent=23 // pred_check_branch
        %200 = sbr.rel (%p198) target = $region36
      $region35: #{forward.1} parent=23 // pred_region
        %p201 = scmp.lt.s32.totalorder %s11, 3
        %s202 = scalar_select %p201, %s11, 3
        %s203 = smul.addr %s202, 8
        %s204 = scalar_lea.vmem %s2, %s203
      $region36: #{forward.1} parent=23 // pred_fallthru
        _
    $region24: #{forward.1} parent=5 // pred_fallthru
      _
    %p205 = scmp.le.s32.totalorder 1, %s11
    %p206 = scmp.lt.s32.totalorder %s11, 5
    %p207 = pnand %p205, %p206
    %p208 = pneg %p207
    // Predicated region
    $region37: #{forward.1} parent=5 // pred_check
      _
    $region38: #{forward.1} parent=5 // pred_check_branch
      %210 = sbr.rel (%p207) target = $region40
    $region39: #{forward.1} parent=5 // pred_region
      %s211 = ssub.s32 %s11, 1
      %p212 = scmp.lt.s32.totalorder %s16, 3
      %s213 = scalar_select %p212, %s16, 3
      %s214 = smul.addr %s213, 2
      %s215 = smul.addr %s214, 8
      %s216 = scalar_lea.vmem %s0, %s215
      %p217 = pneg %p37
      %p218 = pneg %p34
      %p219 = scmp.lt.s32.totalorder %s16, 3
      %s220 = scalar_select %p219, %s16, 3
      %s221 = smul.addr %s220, 4
      %s222 = smul.addr %s221, 8
      %s223 = scalar_lea.vmem %s1, %s222
      %p224 = pneg %p63
      %p225 = pneg %p60
      %p226 = scmp.lt.s32.totalorder %s16, 3
      %s227 = scalar_select %p226, %s16, 3
      %s228 = smul.addr %s227, 8
      %s229 = scalar_lea.vmem %s2, %s228
      %p230 = pneg %p89
      %p231 = pneg %p86
      %p232 = pneg %p110
      %p233 = pneg %p107
      %p234 = pneg %p131
      %p235 = pneg %p128
      %p236 = pneg %p157
      %p237 = pneg %p154
      %p238 = scmp.lt.s32.totalorder %s16, 3
      %s239 = scalar_select %p238, %s16, 3
      %s240 = smul.addr %s239, 2
      %s241 = smul.addr %s240, 8
      %s242 = scalar_lea.vmem %s5, %s241
      %p243 = scmp.lt.s32.totalorder %s16, 3
      %s244 = scalar_select %p243, %s16, 3
      %s245 = smul.addr %s244, 2
      %s246 = smul.addr %s245, 8
      %s247 = scalar_lea.vmem %s0, %s246
      %p248 = scmp.lt.s32.totalorder %s16, 3
      %s249 = scalar_select %p248, %s16, 3
      %s250 = smul.addr %s249, 4
      %s251 = smul.addr %s250, 8
      %s252 = scalar_lea.vmem %s1, %s251
      %p253 = scmp.lt.s32.totalorder %s16, 3
      %s254 = scalar_select %p253, %s16, 3
      %s255 = smul.addr %s254, 8
      %s256 = scalar_lea.vmem %s2, %s255
      %p257 = scmp.lt.s32.totalorder %s16, 3
      %s258 = scalar_select %p257, %s16, 3
      %s259 = smul.addr %s258, 2
      %s260 = smul.addr %s259, 8
      %s261 = scalar_lea.vmem %s5, %s260
      %v262 = vld [vmem:[%s247] sm:$0xff]
      %v263 = vld [vmem:[%s247 + $0x8] sm:$0xff]
      %v264 = vld [vmem:[%s252] sm:$0xff]
      %v265 = vld [vmem:[%s252 + $0x8] sm:$0xff]
      %v266 = vld [vmem:[%s252 + $0x10] sm:$0xff]
      %v267 = vld [vmem:[%s252 + $0x18] sm:$0xff]
      %v268 = vld [vmem:[%s256] sm:$0xff]
      %v269 = vcvt.f32.s32.to.zero.pseudo %v264
      %v270 = vcvt.f32.s32.to.zero.pseudo %v265
      %v271 = vcvt.f32.s32.to.zero.pseudo %v266
      %v272 = vcvt.f32.s32.to.zero.pseudo %v267
      %v273 = vlaneseq
      %v274 = vand.u32 %v273, 127
      %275 = vset.pattern.permute.xlu0 4
      %276 = vperm.xlu0 %275, %v269
      %v277 = vpop.permute.xlu0 %276
      %278 = vset.pattern.permute.xlu0 4
      %279 = vperm.xlu0 %278, %v270
      %v280 = vpop.permute.xlu0 %279
      %281 = vset.pattern.permute.xlu0 4
      %282 = vperm.xlu0 %281, %v271
      %v283 = vpop.permute.xlu0 %282
      %284 = vset.pattern.permute.xlu0 4
      %285 = vperm.xlu0 %284, %v272
      %v286 = vpop.permute.xlu0 %285
      %vm287 = vcmp.eq.s32.totalorder %v277, %v274
      %vm288 = vcmp.eq.s32.totalorder %v280, %v274
      %vm289 = vcmp.eq.s32.totalorder %v283, %v274
      %vm290 = vcmp.eq.s32.totalorder %v286, %v274
      %v291 = vsel %vm287, 1, 0
      %v292 = vsel %vm288, 1, 0
      %v293 = vsel %vm289, 1, 0
      %v294 = vsel %vm290, 1, 0
      %v295 = vcvt.s32.f32 %v291
      %v296 = vcvt.s32.f32 %v292
      %v297 = vcvt.s32.f32 %v293
      %v298 = vcvt.s32.f32 %v294
      %v299 = vcvt.f32.s32.to.zero.pseudo %v268
      %v300 = vlaneseq
      %v301 = vshrl.u32 %v300, 7
      %v302 = vadd.s32 %v301, 8
      %v303 = vlaneseq
      %v304 = vshrl.u32 %v303, 7
      %v305 = vsub.s32 0, %v304
      %v306 = vrot.slane %v299, %v305
      %vm307 = vcmp.eq.s32.totalorder %v306, %v301
      %vm308 = vcmp.eq.s32.totalorder %v306, %v302
      %v309 = vsel %vm307, 1, 0
      %v310 = vsel %vm308, 1, 0
      %v311 = vcvt.s32.f32 %v309
      %v312 = vcvt.s32.f32 %v310
      %v313 = vlaneseq
      %v314 = vshrl.u32 %v313, 7
      %v315 = vsub.s32 1, %v314
      %v316 = vrot.slane %v268, %v315
      %v317 = vmul.f32 %v311, %v316
      %v318 = vmul.f32 %v312, %v316
      %v319 = vld [vmem:[%s3] sm:$0xff]
      %v320 = vld [vmem:[%s3 + $0x8] sm:$0xff]
      %v321 = vld [vmem:[%s3 + $0x10] sm:$0xff]
      %v322 = vld [vmem:[%s3 + $0x18] sm:$0xff]
      %v323 = vld [vmem:[%s3 + $0x20] sm:$0xff]
      %v324 = vld [vmem:[%s3 + $0x28] sm:$0xff]
      %v325 = vld [vmem:[%s3 + $0x30] sm:$0xff]
      %v326 = vld [vmem:[%s3 + $0x38] sm:$0xff]
      %v327 = vld [vmem:[%s3 + $0x40] sm:$0xff]
      %v328 = vld [vmem:[%s3 + $0x48] sm:$0xff]
      %v329 = vld [vmem:[%s4] sm:$0x1]
      %v330 = vld [vmem:[%s4 + $0x1] sm:$0x1]
      %v331 = vld [vmem:[%s4 + $0x2] sm:$0x1]
      %v332 = vld [vmem:[%s4 + $0x3] sm:$0x1]
      %v333 = vld [vmem:[%s4 + $0x4] sm:$0x1]
      %v334 = vlaneseq
      %v335 = vshrl.u32 %v334, 7
      %v336 = vsub.s32 0, %v335
      %v337 = vrot.slane %v329, %v336
      %vm338 = vcmask 64512
      %v340 = vsel %vm338, %v264, 0
      %v343 = vsel %vm338, %v265, 0
      %v346 = vsel %vm338, %v266, 0
      %v349 = vsel %vm338, %v267, 0
      %351 = vmatprep.subr.mxu0 0.0
      %352 = vmatpush1.msra.mxu0 %v319
      %353 = vmatprep.subr.mxu0 0.0
      %354 = vmatpush1.msra.mxu0 0.0
      %355 = vmatprep.subr.mxu0 0.0
      %356 = vmatpush1.msra.mxu0 0.0
      %357 = vmatprep.subr.mxu0 0.0
      %358 = vmatpush1.msra.mxu0 0.0
      %359 = vmatprep.subr.mxu0 0.0
      %360 = vmatpush1.msra.mxu0 0.0
      %361 = vmatprep.subr.mxu0 0.0
      %362 = vmatpush1.msra.mxu0 0.0
      %363 = vmatprep.subr.mxu0 0.0
      %364 = vmatpush1.msra.mxu0 0.0
      %365 = vmatprep.subr.mxu0 0.0
      %366 = vmatpush1.msra.mxu0 0.0
      %367 = vmatprep.subr.mxu0 0.0
      %368 = vmatpush1.msra.mxu0 0.0
      %369 = vmatprep.subr.mxu0 0.0
      %370 = vmatpush1.msra.mxu0 0.0
      %371 = vmatprep.subr.mxu0 0.0
      %372 = vmatpush1.msra.mxu0 0.0
      %373 = vmatprep.subr.mxu0 0.0
      %374 = vmatpush1.msra.mxu0 0.0
      %375 = vmatprep.subr.mxu0 0.0
      %376 = vmatpush1.msra.mxu0 0.0
      %377 = vmatprep.subr.mxu0 0.0
      %378 = vmatpush1.msra.mxu0 0.0
      %379 = vmatprep.subr.mxu0 0.0
      %380 = vmatpush1.msra.mxu0 0.0
      %381 = vmatprep.subr.mxu0 0.0
      %382 = vmatpush1.msra.mxu0 0.0
      %383 = vmatprep.subr.mxu0 0.0
      %384 = vmatpush1.msra.mxu0 0.0
      %385 = vmatprep.subr.mxu0 0.0
      %386 = vmatpush1.msra.mxu0 0.0
      %387 = vmatprep.subr.mxu0 0.0
      %388 = vmatpush1.msra.mxu0 0.0
      %389 = vmatprep.subr.mxu0 0.0
      %390 = vmatpush1.msra.mxu0 0.0
      %391 = vmatprep.subr.mxu0 0.0
      %392 = vmatpush1.msra.mxu0 0.0
      %393 = vmatprep.subr.mxu0 0.0
      %394 = vmatpush1.msra.mxu0 0.0
      %395 = vmatprep.subr.mxu0 0.0
      %396 = vmatpush1.msra.mxu0 0.0
      %397 = vmatprep.subr.mxu0 0.0
      %398 = vmatpush1.msra.mxu0 0.0
      %399 = vmatprep.subr.mxu0 0.0
      %400 = vmatpush1.msra.mxu0 0.0
      %401 = vmatprep.subr.mxu0 0.0
      %402 = vmatpush1.msra.mxu0 0.0
      %403 = vmatprep.subr.mxu0 0.0
      %404 = vmatpush1.msra.mxu0 0.0
      %405 = vmatprep.subr.mxu0 0.0
      %406 = vmatpush1.msra.mxu0 0.0
      %407 = vmatprep.subr.mxu0 0.0
      %408 = vmatpush1.msra.mxu0 0.0
      %409 = vmatprep.subr.mxu0 0.0
      %410 = vmatpush1.msra.mxu0 0.0
      %411 = vmatprep.subr.mxu0 0.0
      %412 = vmatpush1.msra.mxu0 0.0
      %413 = vmatprep.subr.mxu0 0.0
      %414 = vmatpush1.msra.mxu0 0.0
      %415 = vmatprep.mubr.f32.mxu0 0.0
      %416 = vmatmul.mubr.f32.gmra.mrb[0].mxu0 %v340
      %v417 = vpop.f32.mrb[0].mxu0
      %v418 = vadd.f32 %v337, %v417
      %v419 = vpop.f32.mrb[0].mxu0
      %420 = vmatprep.mubr.f32.mxu0 0.0
      %421 = vmatmul.mubr.f32.gmra.mrb[0].mxu0 %v343
      %v422 = vpop.f32.mrb[0].mxu0
      %v423 = vadd.f32 %v337, %v422
      %v424 = vpop.f32.mrb[0].mxu0
      %425 = vmatprep.mubr.f32.mxu0 0.0
      %426 = vmatmul.mubr.f32.gmra.mrb[0].mxu0 %v346
      %v427 = vpop.f32.mrb[0].mxu0
      %v428 = vadd.f32 %v337, %v427
      %v429 = vpop.f32.mrb[0].mxu0
      %430 = vmatprep.mubr.f32.mxu0 0.0
      %431 = vmatmul.mubr.f32.gmra.mrb[0].mxu0 %v349
      %v432 = vpop.f32.mrb[0].mxu0
      %v433 = vadd.f32 %v337, %v432
      %v434 = vpop.f32.mrb[0].mxu0
      %435 = vdwg.mxu0
      %vm436 = vcmask 130048
      %v438 = vsel %vm436, %v295, 0
      %v441 = vsel %vm436, %v296, 0
      %v444 = vsel %vm436, %v297, 0
      %v447 = vsel %vm436, %v298, 0
      %449 = vmatprep.subr.mxu0 0.0
      %450 = vmatpush1.msra.mxu0 %v262
      %451 = vmatprep.subr.mxu0 0.0
      %452 = vmatpush1.msra.mxu0 %v263
      %453 = vmatprep.subr.mxu0 0.0
      %454 = vmatpush1.msra.mxu0 0.0
      %455 = vmatprep.subr.mxu0 0.0
      %456 = vmatpush1.msra.mxu0 0.0
      %457 = vmatprep.subr.mxu0 0.0
      %458 = vmatpush1.msra.mxu0 0.0
      %459 = vmatprep.subr.mxu0 0.0
      %460 = vmatpush1.msra.mxu0 0.0
      %461 = vmatprep.subr.mxu0 0.0
      %462 = vmatpush1.msra.mxu0 0.0
      %463 = vmatprep.subr.mxu0 0.0
      %464 = vmatpush1.msra.mxu0 0.0
      %465 = vmatprep.subr.mxu0 0.0
      %466 = vmatpush1.msra.mxu0 0.0
      %467 = vmatprep.subr.mxu0 0.0
      %468 = vmatpush1.msra.mxu0 0.0
      %469 = vmatprep.subr.mxu0 0.0
      %470 = vmatpush1.msra.mxu0 0.0
      %471 = vmatprep.subr.mxu0 0.0
      %472 = vmatpush1.msra.mxu0 0.0
      %473 = vmatprep.subr.mxu0 0.0
      %474 = vmatpush1.msra.mxu0 0.0
      %475 = vmatprep.subr.mxu0 0.0
      %476 = vmatpush1.msra.mxu0 0.0
      %477 = vmatprep.subr.mxu0 0.0
      %478 = vmatpush1.msra.mxu0 0.0
      %479 = vmatprep.subr.mxu0 0.0
      %480 = vmatpush1.msra.mxu0 0.0
      %481 = vmatprep.subr.mxu0 0.0
      %482 = vmatpush1.msra.mxu0 0.0
      %483 = vmatprep.subr.mxu0 0.0
      %484 = vmatpush1.msra.mxu0 0.0
      %485 = vmatprep.subr.mxu0 0.0
      %486 = vmatpush1.msra.mxu0 0.0
      %487 = vmatprep.subr.mxu0 0.0
      %488 = vmatpush1.msra.mxu0 0.0
      %489 = vmatprep.subr.mxu0 0.0
      %490 = vmatpush1.msra.mxu0 0.0
      %491 = vmatprep.subr.mxu0 0.0
      %492 = vmatpush1.msra.mxu0 0.0
      %493 = vmatprep.subr.mxu0 0.0
      %494 = vmatpush1.msra.mxu0 0.0
      %495 = vmatprep.subr.mxu0 0.0
      %496 = vmatpush1.msra.mxu0 0.0
      %497 = vmatprep.subr.mxu0 0.0
      %498 = vmatpush1.msra.mxu0 0.0
      %499 = vmatprep.subr.mxu0 0.0
      %500 = vmatpush1.msra.mxu0 0.0
      %501 = vmatprep.subr.mxu0 0.0
      %502 = vmatpush1.msra.mxu0 0.0
      %503 = vmatprep.subr.mxu0 0.0
      %504 = vmatpush1.msra.mxu0 0.0
      %505 = vmatprep.subr.mxu0 0.0
      %506 = vmatpush1.msra.mxu0 0.0
      %507 = vmatprep.subr.mxu0 0.0
      %508 = vmatpush1.msra.mxu0 0.0
      %509 = vmatprep.subr.mxu0 0.0
      %510 = vmatpush1.msra.mxu0 0.0
      %511 = vmatprep.subr.mxu0 0.0
      %512 = vmatpush1.msra.mxu0 0.0
      %513 = vmatprep.mubr.f32.mxu0 0.0
      %514 = vmatmul.mubr.f32.gmra.mrb[0].mxu0 %v438
      %v515 = vpop.f32.mrb[0].mxu0
      %v516 = vadd.f32 %v418, %v515
      %v517 = vpop.f32.mrb[0].mxu0
      %518 = vmatprep.mubr.f32.mxu0 0.0
      %519 = vmatmul.mubr.f32.gmra.mrb[0].mxu0 %v441
      %v520 = vpop.f32.mrb[0].mxu0
      %v521 = vadd.f32 %v423, %v520
      %v522 = vpop.f32.mrb[0].mxu0
      %523 = vmatprep.mubr.f32.mxu0 0.0
      %524 = vmatmul.mubr.f32.gmra.mrb[0].mxu0 %v444
      %v525 = vpop.f32.mrb[0].mxu0
      %v526 = vadd.f32 %v428, %v525
      %v527 = vpop.f32.mrb[0].mxu0
      %528 = vmatprep.mubr.f32.mxu0 0.0
      %529 = vmatmul.mubr.f32.gmra.mrb[0].mxu0 %v447
      %v530 = vpop.f32.mrb[0].mxu0
      %v531 = vadd.f32 %v433, %v530
      %v532 = vpop.f32.mrb[0].mxu0
      %533 = vdwg.mxu0
      %v534 = vmax.f32 %v516, 0.0
      %v535 = vmax.f32 %v521, 0.0
      %v536 = vmax.f32 %v526, 0.0
      %v537 = vmax.f32 %v531, 0.0
      %vm538 = vcmask 261120
      %v540 = vsel %vm538, %v317, 0
      %v543 = vsel %vm538, %v318, 0
      %545 = vmatprep.subr.mxu0 0.0
      %546 = vmatpush1.msra.mxu0 %v534
      %547 = vmatprep.subr.mxu0 0.0
      %548 = vmatpush1.msra.mxu0 %v535
      %549 = vmatprep.subr.mxu0 0.0
      %550 = vmatpush1.msra.mxu0 %v536
      %551 = vmatprep.subr.mxu0 0.0
      %552 = vmatpush1.msra.mxu0 %v537
      %553 = vmatprep.subr.mxu0 0.0
      %554 = vmatpush1.msra.mxu0 0.0
      %555 = vmatprep.subr.mxu0 0.0
      %556 = vmatpush1.msra.mxu0 0.0
      %557 = vmatprep.subr.mxu0 0.0
      %558 = vmatpush1.msra.mxu0 0.0
      %559 = vmatprep.subr.mxu0 0.0
      %560 = vmatpush1.msra.mxu0 0.0
      %561 = vmatprep.subr.mxu0 0.0
      %562 = vmatpush1.msra.mxu0 0.0
      %563 = vmatprep.subr.mxu0 0.0
      %564 = vmatpush1.msra.mxu0 0.0
      %565 = vmatprep.subr.mxu0 0.0
      %566 = vmatpush1.msra.mxu0 0.0
      %567 = vmatprep.subr.mxu0 0.0
      %568 = vmatpush1.msra.mxu0 0.0
      %569 = vmatprep.subr.mxu0 0.0
      %570 = vmatpush1.msra.mxu0 0.0
      %571 = vmatprep.subr.mxu0 0.0
      %572 = vmatpush1.msra.mxu0 0.0
      %573 = vmatprep.subr.mxu0 0.0
      %574 = vmatpush1.msra.mxu0 0.0
      %575 = vmatprep.subr.mxu0 0.0
      %576 = vmatpush1.msra.mxu0 0.0
      %577 = vmatprep.subr.mxu0 0.0
      %578 = vmatpush1.msra.mxu0 0.0
      %579 = vmatprep.subr.mxu0 0.0
      %580 = vmatpush1.msra.mxu0 0.0
      %581 = vmatprep.subr.mxu0 0.0
      %582 = vmatpush1.msra.mxu0 0.0
      %583 = vmatprep.subr.mxu0 0.0
      %584 = vmatpush1.msra.mxu0 0.0
      %585 = vmatprep.subr.mxu0 0.0
      %586 = vmatpush1.msra.mxu0 0.0
      %587 = vmatprep.subr.mxu0 0.0
      %588 = vmatpush1.msra.mxu0 0.0
      %589 = vmatprep.subr.mxu0 0.0
      %590 = vmatpush1.msra.mxu0 0.0
      %591 = vmatprep.subr.mxu0 0.0
      %592 = vmatpush1.msra.mxu0 0.0
      %593 = vmatprep.subr.mxu0 0.0
      %594 = vmatpush1.msra.mxu0 0.0
      %595 = vmatprep.subr.mxu0 0.0
      %596 = vmatpush1.msra.mxu0 0.0
      %597 = vmatprep.subr.mxu0 0.0
      %598 = vmatpush1.msra.mxu0 0.0
      %599 = vmatprep.subr.mxu0 0.0
      %600 = vmatpush1.msra.mxu0 0.0
      %601 = vmatprep.subr.mxu0 0.0
      %602 = vmatpush1.msra.mxu0 0.0
      %603 = vmatprep.subr.mxu0 0.0
      %604 = vmatpush1.msra.mxu0 0.0
      %605 = vmatprep.subr.mxu0 0.0
      %606 = vmatpush1.msra.mxu0 0.0
      %607 = vmatprep.subr.mxu0 0.0
      %608 = vmatpush1.msra.mxu0 0.0
      %609 = vmatprep.mubr.f32.mxu0 0.0
      %610 = vmatmul.mubr.f32.gmra.mrb[0].mxu0 %v540
      %v611 = vpop.f32.mrb[0].mxu0
      %v612 = vadd.f32 0.0, %v611
      %v613 = vpop.f32.mrb[0].mxu0
      %614 = vmatprep.mubr.f32.mxu0 0.0
      %615 = vmatmul.mubr.f32.gmra.mrb[0].mxu0 %v543
      %v616 = vpop.f32.mrb[0].mxu0
      %v617 = vadd.f32 0.0, %v616
      %v618 = vpop.f32.mrb[0].mxu0
      %619 = vdwg.mxu0
      %v620 = vadd.f32 %v262, %v612
      %v621 = vadd.f32 %v263, %v617
      %v622 = vlaneseq
      %v623 = vshrl.u32 %v622, 7
      %v624 = vsub.s32 0, %v623
      %v625 = vrot.slane %v330, %v624
      %v627 = vsel %vm338, %v620, 0
      %v630 = vsel %vm338, %v621, 0
      %632 = vmatprep.subr.mxu0 0.0
      %633 = vmatpush1.msra.mxu0 %v320
      %634 = vmatprep.subr.mxu0 0.0
      %635 = vmatpush1.msra.mxu0 0.0
      %636 = vmatprep.subr.mxu0 0.0
      %637 = vmatpush1.msra.mxu0 0.0
      %638 = vmatprep.subr.mxu0 0.0
      %639 = vmatpush1.msra.mxu0 0.0
      %640 = vmatprep.subr.mxu0 0.0
      %641 = vmatpush1.msra.mxu0 0.0
      %642 = vmatprep.subr.mxu0 0.0
      %643 = vmatpush1.msra.mxu0 0.0
      %644 = vmatprep.subr.mxu0 0.0
      %645 = vmatpush1.msra.mxu0 0.0
      %646 = vmatprep.subr.mxu0 0.0
      %647 = vmatpush1.msra.mxu0 0.0
      %648 = vmatprep.subr.mxu0 0.0
      %649 = vmatpush1.msra.mxu0 0.0
      %650 = vmatprep.subr.mxu0 0.0
      %651 = vmatpush1.msra.mxu0 0.0
      %652 = vmatprep.subr.mxu0 0.0
      %653 = vmatpush1.msra.mxu0 0.0
      %654 = vmatprep.subr.mxu0 0.0
      %655 = vmatpush1.msra.mxu0 0.0
      %656 = vmatprep.subr.mxu0 0.0
      %657 = vmatpush1.msra.mxu0 0.0
      %658 = vmatprep.subr.mxu0 0.0
      %659 = vmatpush1.msra.mxu0 0.0
      %660 = vmatprep.subr.mxu0 0.0
      %661 = vmatpush1.msra.mxu0 0.0
      %662 = vmatprep.subr.mxu0 0.0
      %663 = vmatpush1.msra.mxu0 0.0
      %664 = vmatprep.subr.mxu0 0.0
      %665 = vmatpush1.msra.mxu0 0.0
      %666 = vmatprep.subr.mxu0 0.0
      %667 = vmatpush1.msra.mxu0 0.0
      %668 = vmatprep.subr.mxu0 0.0
      %669 = vmatpush1.msra.mxu0 0.0
      %670 = vmatprep.subr.mxu0 0.0
      %671 = vmatpush1.msra.mxu0 0.0
      %672 = vmatprep.subr.mxu0 0.0
      %673 = vmatpush1.msra.mxu0 0.0
      %674 = vmatprep.subr.mxu0 0.0
      %675 = vmatpush1.msra.mxu0 0.0
      %676 = vmatprep.subr.mxu0 0.0
      %677 = vmatpush1.msra.mxu0 0.0
      %678 = vmatprep.subr.mxu0 0.0
      %679 = vmatpush1.msra.mxu0 0.0
      %680 = vmatprep.subr.mxu0 0.0
      %681 = vmatpush1.msra.mxu0 0.0
      %682 = vmatprep.subr.mxu0 0.0
      %683 = vmatpush1.msra.mxu0 0.0
      %684 = vmatprep.subr.mxu0 0.0
      %685 = vmatpush1.msra.mxu0 0.0
      %686 = vmatprep.subr.mxu0 0.0
      %687 = vmatpush1.msra.mxu0 0.0
      %688 = vmatprep.subr.mxu0 0.0
      %689 = vmatpush1.msra.mxu0 0.0
      %690 = vmatprep.subr.mxu0 0.0
      %691 = vmatpush1.msra.mxu0 0.0
      %692 = vmatprep.subr.mxu0 0.0
      %693 = vmatpush1.msra.mxu0 0.0
      %694 = vmatprep.subr.mxu0 0.0
      %695 = vmatpush1.msra.mxu0 0.0
      %696 = vmatprep.mubr.f32.mxu0 0.0
      %697 = vmatmul.mubr.f32.gmra.mrb[0].mxu0 %v627
      %v698 = vpop.f32.mrb[0].mxu0
      %v699 = vadd.f32 %v625, %v698
      %v700 = vpop.f32.mrb[0].mxu0
      %701 = vmatprep.mubr.f32.mxu0 0.0
      %702 = vmatmul.mubr.f32.gmra.mrb[0].mxu0 %v630
      %v703 = vpop.f32.mrb[0].mxu0
      %v704 = vadd.f32 %v625, %v703
      %v705 = vpop.f32.mrb[0].mxu0
      %706 = vdwg.mxu0
      %v707 = vmax.f32 %v699, 0.0
      %v708 = vmax.f32 %v704, 0.0
      %v709 = vlaneseq
      %v710 = vshrl.u32 %v709, 7
      %v711 = vsub.s32 0, %v710
      %v712 = vrot.slane %v331, %v711
      %vm713 = vcmask 523264
      %v715 = vsel %vm713, %v707, 0
      %v718 = vsel %vm713, %v708, 0
      %720 = vmatprep.subr.mxu0 0.0
      %721 = vmatpush1.msra.mxu0 %v321
      %722 = vmatprep.subr.mxu0 0.0
      %723 = vmatpush1.msra.mxu0 %v322
      %724 = vmatprep.subr.mxu0 0.0
      %725 = vmatpush1.msra.mxu0 %v323
      %726 = vmatprep.subr.mxu0 0.0
      %727 = vmatpush1.msra.mxu0 %v324
      %728 = vmatprep.subr.mxu0 0.0
      %729 = vmatpush1.msra.mxu0 %v325
      %730 = vmatprep.subr.mxu0 0.0
      %731 = vmatpush1.msra.mxu0 %v326
      %732 = vmatprep.subr.mxu0 0.0
      %733 = vmatpush1.msra.mxu0 %v327
      %734 = vmatprep.subr.mxu0 0.0
      %735 = vmatpush1.msra.mxu0 %v328
      %736 = vmatprep.subr.mxu0 0.0
      %737 = vmatpush1.msra.mxu0 0.0
      %738 = vmatprep.subr.mxu0 0.0
      %739 = vmatpush1.msra.mxu0 0.0
      %740 = vmatprep.subr.mxu0 0.0
      %741 = vmatpush1.msra.mxu0 0.0
      %742 = vmatprep.subr.mxu0 0.0
      %743 = vmatpush1.msra.mxu0 0.0
      %744 = vmatprep.subr.mxu0 0.0
      %745 = vmatpush1.msra.mxu0 0.0
      %746 = vmatprep.subr.mxu0 0.0
      %747 = vmatpush1.msra.mxu0 0.0
      %748 = vmatprep.subr.mxu0 0.0
      %749 = vmatpush1.msra.mxu0 0.0
      %750 = vmatprep.subr.mxu0 0.0
      %751 = vmatpush1.msra.mxu0 0.0
      %752 = vmatprep.subr.mxu0 0.0
      %753 = vmatpush1.msra.mxu0 0.0
      %754 = vmatprep.subr.mxu0 0.0
      %755 = vmatpush1.msra.mxu0 0.0
      %756 = vmatprep.subr.mxu0 0.0
      %757 = vmatpush1.msra.mxu0 0.0
      %758 = vmatprep.subr.mxu0 0.0
      %759 = vmatpush1.msra.mxu0 0.0
      %760 = vmatprep.subr.mxu0 0.0
      %761 = vmatpush1.msra.mxu0 0.0
      %762 = vmatprep.subr.mxu0 0.0
      %763 = vmatpush1.msra.mxu0 0.0
      %764 = vmatprep.subr.mxu0 0.0
      %765 = vmatpush1.msra.mxu0 0.0
      %766 = vmatprep.subr.mxu0 0.0
      %767 = vmatpush1.msra.mxu0 0.0
      %768 = vmatprep.subr.mxu0 0.0
      %769 = vmatpush1.msra.mxu0 0.0
      %770 = vmatprep.subr.mxu0 0.0
      %771 = vmatpush1.msra.mxu0 0.0
      %772 = vmatprep.subr.mxu0 0.0
      %773 = vmatpush1.msra.mxu0 0.0
      %774 = vmatprep.subr.mxu0 0.0
      %775 = vmatpush1.msra.mxu0 0.0
      %776 = vmatprep.subr.mxu0 0.0
      %777 = vmatpush1.msra.mxu0 0.0
      %778 = vmatprep.subr.mxu0 0.0
      %779 = vmatpush1.msra.mxu0 0.0
      %780 = vmatprep.subr.mxu0 0.0
      %781 = vmatpush1.msra.mxu0 0.0
      %782 = vmatprep.subr.mxu0 0.0
      %783 = vmatpush1.msra.mxu0 0.0
      %784 = vmatprep.mubr.f32.mxu0 0.0
      %785 = vmatmul.mubr.f32.gmra.mrb[0].mxu0 %v715
      %v786 = vpop.f32.mrb[0].mxu0
      %v787 = vadd.f32 %v712, %v786
      %v788 = vpop.f32.mrb[0].mxu0
      %789 = vmatprep.mubr.f32.mxu0 0.0
      %790 = vmatmul.mubr.f32.gmra.mrb[0].mxu0 %v718
      %v791 = vpop.f32.mrb[0].mxu0
      %v792 = vadd.f32 %v712, %v791
      %v793 = vpop.f32.mrb[0].mxu0
      %794 = vdwg.mxu0
      %v795 = vmax.f32 %v787, 0.0
      %v796 = vmax.f32 %v792, 0.0
      %v797 = vsel %vm538, %v795, 0.0
      %v798 = vsel %vm538, %v796, 0.0
      %v799 = vadd.f32 %v797, %v798
      %v800 = vrot.slane %v799, 4
      %v801 = vadd.f32 %v799, %v800
      %v802 = vrot.slane %v801, 2
      %v803 = vadd.f32 %v801, %v802
      %v804 = vrot.slane %v803, 1
      %v805 = vadd.f32 %v803, %v804
      %v806 = vrcp.pop 16.0
      %v807 = vmul.f32 %v805, %v806
      %v808 = vsub.f32 %v795, %v807
      %v809 = vsub.f32 %v796, %v807
      %v810 = vmul.f32 %v808, %v808
      %v811 = vmul.f32 %v809, %v809
      %v812 = vsel %vm538, %v810, 0.0
      %v813 = vsel %vm538, %v811, 0.0
      %v814 = vadd.f32 %v812, %v813
      %v815 = vrot.slane %v814, 4
      %v816 = vadd.f32 %v814, %v815
      %v817 = vrot.slane %v816, 2
      %v818 = vadd.f32 %v816, %v817
      %v819 = vrot.slane %v818, 1
      %v820 = vadd.f32 %v818, %v819
      %v821 = vmul.f32 %v820, %v806
      %v822 = vadd.f32 %v821, 1e-05
      %v823 = vrsqrt.pop %v822
      %v824 = vmul.f32 %v808, %v823
      %v825 = vmul.f32 %v809, %v823
      %v826 = vlaneseq
      %v827 = vshrl.u32 %v826, 7
      %v828 = vsub.s32 0, %v827
      %v829 = vrot.slane %v332, %v828
      %v830 = vmul.f32 %v824, %v829
      %v831 = vmul.f32 %v825, %v829
      %v832 = vlaneseq
      %v833 = vshrl.u32 %v832, 7
      %v834 = vsub.s32 0, %v833
      %v835 = vrot.slane %v333, %v834
      %v836 = vadd.f32 %v830, %v835
      %v837 = vadd.f32 %v831, %v835
      %v838 = vld [vmem:[%s3 + $0x50] sm:$0xff]
      %v839 = vld [vmem:[%s3 + $0x58] sm:$0xff]
      %v840 = vld [vmem:[%s3 + $0x60] sm:$0xff]
      %v841 = vld [vmem:[%s3 + $0x68] sm:$0xff]
      %v842 = vld [vmem:[%s3 + $0x70] sm:$0xff]
      %v843 = vld [vmem:[%s3 + $0x78] sm:$0xff]
      %v844 = vld [vmem:[%s3 + $0x80] sm:$0xff]
      %v845 = vld [vmem:[%s3 + $0x88] sm:$0xff]
      %v846 = vld [vmem:[%s3 + $0x90] sm:$0xff]
      %v847 = vld [vmem:[%s3 + $0x98] sm:$0xff]
      %v848 = vld [vmem:[%s3 + $0xa0] sm:$0xff]
      %v849 = vld [vmem:[%s3 + $0xa8] sm:$0xff]
      %v850 = vld [vmem:[%s3 + $0xb0] sm:$0xff]
      %v851 = vld [vmem:[%s4 + $0x5] sm:$0x1]
      %v852 = vld [vmem:[%s4 + $0x6] sm:$0x1]
      %v853 = vld [vmem:[%s4 + $0x7] sm:$0x1]
      %v854 = vld [vmem:[%s4 + $0x8] sm:$0x1]
      %v855 = vld [vmem:[%s4 + $0x9] sm:$0x1]
      %v856 = vlaneseq
      %v857 = vshrl.u32 %v856, 7
      %v858 = vsub.s32 0, %v857
      %v859 = vrot.slane %v851, %v858
      %860 = vmatprep.subr.mxu0 0.0
      %861 = vmatpush1.msra.mxu0 %v838
      %862 = vmatprep.subr.mxu0 0.0
      %863 = vmatpush1.msra.mxu0 0.0
      %864 = vmatprep.subr.mxu0 0.0
      %865 = vmatpush1.msra.mxu0 0.0
      %866 = vmatprep.subr.mxu0 0.0
      %867 = vmatpush1.msra.mxu0 0.0
      %868 = vmatprep.subr.mxu0 0.0
      %869 = vmatpush1.msra.mxu0 0.0
      %870 = vmatprep.subr.mxu0 0.0
      %871 = vmatpush1.msra.mxu0 0.0
      %872 = vmatprep.subr.mxu0 0.0
      %873 = vmatpush1.msra.mxu0 0.0
      %874 = vmatprep.subr.mxu0 0.0
      %875 = vmatpush1.msra.mxu0 0.0
      %876 = vmatprep.subr.mxu0 0.0
      %877 = vmatpush1.msra.mxu0 0.0
      %878 = vmatprep.subr.mxu0 0.0
      %879 = vmatpush1.msra.mxu0 0.0
      %880 = vmatprep.subr.mxu0 0.0
      %881 = vmatpush1.msra.mxu0 0.0
      %882 = vmatprep.subr.mxu0 0.0
      %883 = vmatpush1.msra.mxu0 0.0
      %884 = vmatprep.subr.mxu0 0.0
      %885 = vmatpush1.msra.mxu0 0.0
      %886 = vmatprep.subr.mxu0 0.0
      %887 = vmatpush1.msra.mxu0 0.0
      %888 = vmatprep.subr.mxu0 0.0
      %889 = vmatpush1.msra.mxu0 0.0
      %890 = vmatprep.subr.mxu0 0.0
      %891 = vmatpush1.msra.mxu0 0.0
      %892 = vmatprep.subr.mxu0 0.0
      %893 = vmatpush1.msra.mxu0 0.0
      %894 = vmatprep.subr.mxu0 0.0
      %895 = vmatpush1.msra.mxu0 0.0
      %896 = vmatprep.subr.mxu0 0.0
      %897 = vmatpush1.msra.mxu0 0.0
      %898 = vmatprep.subr.mxu0 0.0
      %899 = vmatpush1.msra.mxu0 0.0
      %900 = vmatprep.subr.mxu0 0.0
      %901 = vmatpush1.msra.mxu0 0.0
      %902 = vmatprep.subr.mxu0 0.0
      %903 = vmatpush1.msra.mxu0 0.0
      %904 = vmatprep.subr.mxu0 0.0
      %905 = vmatpush1.msra.mxu0 0.0
      %906 = vmatprep.subr.mxu0 0.0
      %907 = vmatpush1.msra.mxu0 0.0
      %908 = vmatprep.subr.mxu0 0.0
      %909 = vmatpush1.msra.mxu0 0.0
      %910 = vmatprep.subr.mxu0 0.0
      %911 = vmatpush1.msra.mxu0 0.0
      %912 = vmatprep.subr.mxu0 0.0
      %913 = vmatpush1.msra.mxu0 0.0
      %914 = vmatprep.subr.mxu0 0.0
      %915 = vmatpush1.msra.mxu0 0.0
      %916 = vmatprep.subr.mxu0 0.0
      %917 = vmatpush1.msra.mxu0 0.0
      %918 = vmatprep.subr.mxu0 0.0
      %919 = vmatpush1.msra.mxu0 0.0
      %920 = vmatprep.subr.mxu0 0.0
      %921 = vmatpush1.msra.mxu0 0.0
      %922 = vmatprep.subr.mxu0 0.0
      %923 = vmatpush1.msra.mxu0 0.0
      %924 = vmatprep.mubr.f32.mxu0 0.0
      %925 = vmatmul.mubr.f32.gmra.mrb[0].mxu0 %v340
      %v926 = vpop.f32.mrb[0].mxu0
      %v927 = vadd.f32 %v859, %v926
      %v928 = vpop.f32.mrb[0].mxu0
      %929 = vmatprep.mubr.f32.mxu0 0.0
      %930 = vmatmul.mubr.f32.gmra.mrb[0].mxu0 %v343
      %v931 = vpop.f32.mrb[0].mxu0
      %v932 = vadd.f32 %v859, %v931
      %v933 = vpop.f32.mrb[0].mxu0
      %934 = vmatprep.mubr.f32.mxu0 0.0
      %935 = vmatmul.mubr.f32.gmra.mrb[0].mxu0 %v346
      %v936 = vpop.f32.mrb[0].mxu0
      %v937 = vadd.f32 %v859, %v936
      %v938 = vpop.f32.mrb[0].mxu0
      %939 = vmatprep.mubr.f32.mxu0 0.0
      %940 = vmatmul.mubr.f32.gmra.mrb[0].mxu0 %v349
      %v941 = vpop.f32.mrb[0].mxu0
      %v942 = vadd.f32 %v859, %v941
      %v943 = vpop.f32.mrb[0].mxu0
      %944 = vdwg.mxu0
      %945 = vmatprep.subr.mxu0 0.0
      %946 = vmatpush1.msra.mxu0 %v836
      %947 = vmatprep.subr.mxu0 0.0
      %948 = vmatpush1.msra.mxu0 %v837
      %949 = vmatprep.subr.mxu0 0.0
      %950 = vmatpush1.msra.mxu0 0.0
      %951 = vmatprep.subr.mxu0 0.0
      %952 = vmatpush1.msra.mxu0 0.0
      %953 = vmatprep.subr.mxu0 0.0
      %954 = vmatpush1.msra.mxu0 0.0
      %955 = vmatprep.subr.mxu0 0.0
      %956 = vmatpush1.msra.mxu0 0.0
      %957 = vmatprep.subr.mxu0 0.0
      %958 = vmatpush1.msra.mxu0 0.0
      %959 = vmatprep.subr.mxu0 0.0
      %960 = vmatpush1.msra.mxu0 0.0
      %961 = vmatprep.subr.mxu0 0.0
      %962 = vmatpush1.msra.mxu0 0.0
      %963 = vmatprep.subr.mxu0 0.0
      %964 = vmatpush1.msra.mxu0 0.0
      %965 = vmatprep.subr.mxu0 0.0
      %966 = vmatpush1.msra.mxu0 0.0
      %967 = vmatprep.subr.mxu0 0.0
      %968 = vmatpush1.msra.mxu0 0.0
      %969 = vmatprep.subr.mxu0 0.0
      %970 = vmatpush1.msra.mxu0 0.0
      %971 = vmatprep.subr.mxu0 0.0
      %972 = vmatpush1.msra.mxu0 0.0
      %973 = vmatprep.subr.mxu0 0.0
      %974 = vmatpush1.msra.mxu0 0.0
      %975 = vmatprep.subr.mxu0 0.0
      %976 = vmatpush1.msra.mxu0 0.0
      %977 = vmatprep.subr.mxu0 0.0
      %978 = vmatpush1.msra.mxu0 0.0
      %979 = vmatprep.subr.mxu0 0.0
      %980 = vmatpush1.msra.mxu0 0.0
      %981 = vmatprep.subr.mxu0 0.0
      %982 = vmatpush1.msra.mxu0 0.0
      %983 = vmatprep.subr.mxu0 0.0
      %984 = vmatpush1.msra.mxu0 0.0
      %985 = vmatprep.subr.mxu0 0.0
      %986 = vmatpush1.msra.mxu0 0.0
      %987 = vmatprep.subr.mxu0 0.0
      %988 = vmatpush1.msra.mxu0 0.0
      %989 = vmatprep.subr.mxu0 0.0
      %990 = vmatpush1.msra.mxu0 0.0
      %991 = vmatprep.subr.mxu0 0.0
      %992 = vmatpush1.msra.mxu0 0.0
      %993 = vmatprep.subr.mxu0 0.0
      %994 = vmatpush1.msra.mxu0 0.0
      %995 = vmatprep.subr.mxu0 0.0
      %996 = vmatpush1.msra.mxu0 0.0
      %997 = vmatprep.subr.mxu0 0.0
      %998 = vmatpush1.msra.mxu0 0.0
      %999 = vmatprep.subr.mxu0 0.0
      %1000 = vmatpush1.msra.mxu0 0.0
      %1001 = vmatprep.subr.mxu0 0.0
      %1002 = vmatpush1.msra.mxu0 0.0
      %1003 = vmatprep.subr.mxu0 0.0
      %1004 = vmatpush1.msra.mxu0 0.0
      %1005 = vmatprep.subr.mxu0 0.0
      %1006 = vmatpush1.msra.mxu0 0.0
      %1007 = vmatprep.subr.mxu0 0.0
      %1008 = vmatpush1.msra.mxu0 0.0
      %1009 = vmatprep.mubr.f32.mxu0 0.0
      %1010 = vmatmul.mubr.f32.gmra.mrb[0].mxu0 %v438
      %v1011 = vpop.f32.mrb[0].mxu0
      %v1012 = vadd.f32 %v927, %v1011
      %v1013 = vpop.f32.mrb[0].mxu0
      %1014 = vmatprep.mubr.f32.mxu0 0.0
      %1015 = vmatmul.mubr.f32.gmra.mrb[0].mxu0 %v441
      %v1016 = vpop.f32.mrb[0].mxu0
      %v1017 = vadd.f32 %v932, %v1016
      %v1018 = vpop.f32.mrb[0].mxu0
      %1019 = vmatprep.mubr.f32.mxu0 0.0
      %1020 = vmatmul.mubr.f32.gmra.mrb[0].mxu0 %v444
      %v1021 = vpop.f32.mrb[0].mxu0
      %v1022 = vadd.f32 %v937, %v1021
      %v1023 = vpop.f32.mrb[0].mxu0
      %1024 = vmatprep.mubr.f32.mxu0 0.0
      %1025 = vmatmul.mubr.f32.gmra.mrb[0].mxu0 %v447
      %v1026 = vpop.f32.mrb[0].mxu0
      %v1027 = vadd.f32 %v942, %v1026
      %v1028 = vpop.f32.mrb[0].mxu0
      %1029 = vdwg.mxu0
      %v1030 = vmax.f32 %v1012, 0.0
      %v1031 = vmax.f32 %v1017, 0.0
      %v1032 = vmax.f32 %v1022, 0.0
      %v1033 = vmax.f32 %v1027, 0.0
      %1034 = vmatprep.subr.mxu0 0.0
      %1035 = vmatpush1.msra.mxu0 %v1030
      %1036 = vmatprep.subr.mxu0 0.0
      %1037 = vmatpush1.msra.mxu0 %v1031
      %1038 = vmatprep.subr.mxu0 0.0
      %1039 = vmatpush1.msra.mxu0 %v1032
      %1040 = vmatprep.subr.mxu0 0.0
      %1041 = vmatpush1.msra.mxu0 %v1033
      %1042 = vmatprep.subr.mxu0 0.0
      %1043 = vmatpush1.msra.mxu0 0.0
      %1044 = vmatprep.subr.mxu0 0.0
      %1045 = vmatpush1.msra.mxu0 0.0
      %1046 = vmatprep.subr.mxu0 0.0
      %1047 = vmatpush1.msra.mxu0 0.0
      %1048 = vmatprep.subr.mxu0 0.0
      %1049 = vmatpush1.msra.mxu0 0.0
      %1050 = vmatprep.subr.mxu0 0.0
      %1051 = vmatpush1.msra.mxu0 0.0
      %1052 = vmatprep.subr.mxu0 0.0
      %1053 = vmatpush1.msra.mxu0 0.0
      %1054 = vmatprep.subr.mxu0 0.0
      %1055 = vmatpush1.msra.mxu0 0.0
      %1056 = vmatprep.subr.mxu0 0.0
      %1057 = vmatpush1.msra.mxu0 0.0
      %1058 = vmatprep.subr.mxu0 0.0
      %1059 = vmatpush1.msra.mxu0 0.0
      %1060 = vmatprep.subr.mxu0 0.0
      %1061 = vmatpush1.msra.mxu0 0.0
      %1062 = vmatprep.subr.mxu0 0.0
      %1063 = vmatpush1.msra.mxu0 0.0
      %1064 = vmatprep.subr.mxu0 0.0
      %1065 = vmatpush1.msra.mxu0 0.0
      %1066 = vmatprep.subr.mxu0 0.0
      %1067 = vmatpush1.msra.mxu0 0.0
      %1068 = vmatprep.subr.mxu0 0.0
      %1069 = vmatpush1.msra.mxu0 0.0
      %1070 = vmatprep.subr.mxu0 0.0
      %1071 = vmatpush1.msra.mxu0 0.0
      %1072 = vmatprep.subr.mxu0 0.0
      %1073 = vmatpush1.msra.mxu0 0.0
      %1074 = vmatprep.subr.mxu0 0.0
      %1075 = vmatpush1.msra.mxu0 0.0
      %1076 = vmatprep.subr.mxu0 0.0
      %1077 = vmatpush1.msra.mxu0 0.0
      %1078 = vmatprep.subr.mxu0 0.0
      %1079 = vmatpush1.msra.mxu0 0.0
      %1080 = vmatprep.subr.mxu0 0.0
      %1081 = vmatpush1.msra.mxu0 0.0
      %1082 = vmatprep.subr.mxu0 0.0
      %1083 = vmatpush1.msra.mxu0 0.0
      %1084 = vmatprep.subr.mxu0 0.0
      %1085 = vmatpush1.msra.mxu0 0.0
      %1086 = vmatprep.subr.mxu0 0.0
      %1087 = vmatpush1.msra.mxu0 0.0
      %1088 = vmatprep.subr.mxu0 0.0
      %1089 = vmatpush1.msra.mxu0 0.0
      %1090 = vmatprep.subr.mxu0 0.0
      %1091 = vmatpush1.msra.mxu0 0.0
      %1092 = vmatprep.subr.mxu0 0.0
      %1093 = vmatpush1.msra.mxu0 0.0
      %1094 = vmatprep.subr.mxu0 0.0
      %1095 = vmatpush1.msra.mxu0 0.0
      %1096 = vmatprep.subr.mxu0 0.0
      %1097 = vmatpush1.msra.mxu0 0.0
      %1098 = vmatprep.mubr.f32.mxu0 0.0
      %1099 = vmatmul.mubr.f32.gmra.mrb[0].mxu0 %v540
      %v1100 = vpop.f32.mrb[0].mxu0
      %v1101 = vadd.f32 0.0, %v1100
      %v1102 = vpop.f32.mrb[0].mxu0
      %1103 = vmatprep.mubr.f32.mxu0 0.0
      %1104 = vmatmul.mubr.f32.gmra.mrb[0].mxu0 %v543
      %v1105 = vpop.f32.mrb[0].mxu0
      %v1106 = vadd.f32 0.0, %v1105
      %v1107 = vpop.f32.mrb[0].mxu0
      %1108 = vdwg.mxu0
      %v1109 = vadd.f32 %v836, %v1101
      %v1110 = vadd.f32 %v837, %v1106
      %v1111 = vlaneseq
      %v1112 = vshrl.u32 %v1111, 7
      %v1113 = vsub.s32 0, %v1112
      %v1114 = vrot.slane %v852, %v1113
      %v1116 = vsel %vm538, %v1109, 0
      %v1119 = vsel %vm538, %v1110, 0
      %1121 = vmatprep.subr.mxu0 0.0
      %1122 = vmatpush1.msra.mxu0 %v839
      %1123 = vmatprep.subr.mxu0 0.0
      %1124 = vmatpush1.msra.mxu0 %v840
      %1125 = vmatprep.subr.mxu0 0.0
      %1126 = vmatpush1.msra.mxu0 %v841
      %1127 = vmatprep.subr.mxu0 0.0
      %1128 = vmatpush1.msra.mxu0 %v842
      %1129 = vmatprep.subr.mxu0 0.0
      %1130 = vmatpush1.msra.mxu0 0.0
      %1131 = vmatprep.subr.mxu0 0.0
      %1132 = vmatpush1.msra.mxu0 0.0
      %1133 = vmatprep.subr.mxu0 0.0
      %1134 = vmatpush1.msra.mxu0 0.0
      %1135 = vmatprep.subr.mxu0 0.0
      %1136 = vmatpush1.msra.mxu0 0.0
      %1137 = vmatprep.subr.mxu0 0.0
      %1138 = vmatpush1.msra.mxu0 0.0
      %1139 = vmatprep.subr.mxu0 0.0
      %1140 = vmatpush1.msra.mxu0 0.0
      %1141 = vmatprep.subr.mxu0 0.0
      %1142 = vmatpush1.msra.mxu0 0.0
      %1143 = vmatprep.subr.mxu0 0.0
      %1144 = vmatpush1.msra.mxu0 0.0
      %1145 = vmatprep.subr.mxu0 0.0
      %1146 = vmatpush1.msra.mxu0 0.0
      %1147 = vmatprep.subr.mxu0 0.0
      %1148 = vmatpush1.msra.mxu0 0.0
      %1149 = vmatprep.subr.mxu0 0.0
      %1150 = vmatpush1.msra.mxu0 0.0
      %1151 = vmatprep.subr.mxu0 0.0
      %1152 = vmatpush1.msra.mxu0 0.0
      %1153 = vmatprep.subr.mxu0 0.0
      %1154 = vmatpush1.msra.mxu0 0.0
      %1155 = vmatprep.subr.mxu0 0.0
      %1156 = vmatpush1.msra.mxu0 0.0
      %1157 = vmatprep.subr.mxu0 0.0
      %1158 = vmatpush1.msra.mxu0 0.0
      %1159 = vmatprep.subr.mxu0 0.0
      %1160 = vmatpush1.msra.mxu0 0.0
      %1161 = vmatprep.subr.mxu0 0.0
      %1162 = vmatpush1.msra.mxu0 0.0
      %1163 = vmatprep.subr.mxu0 0.0
      %1164 = vmatpush1.msra.mxu0 0.0
      %1165 = vmatprep.subr.mxu0 0.0
      %1166 = vmatpush1.msra.mxu0 0.0
      %1167 = vmatprep.subr.mxu0 0.0
      %1168 = vmatpush1.msra.mxu0 0.0
      %1169 = vmatprep.subr.mxu0 0.0
      %1170 = vmatpush1.msra.mxu0 0.0
      %1171 = vmatprep.subr.mxu0 0.0
      %1172 = vmatpush1.msra.mxu0 0.0
      %1173 = vmatprep.subr.mxu0 0.0
      %1174 = vmatpush1.msra.mxu0 0.0
      %1175 = vmatprep.subr.mxu0 0.0
      %1176 = vmatpush1.msra.mxu0 0.0
      %1177 = vmatprep.subr.mxu0 0.0
      %1178 = vmatpush1.msra.mxu0 0.0
      %1179 = vmatprep.subr.mxu0 0.0
      %1180 = vmatpush1.msra.mxu0 0.0
      %1181 = vmatprep.subr.mxu0 0.0
      %1182 = vmatpush1.msra.mxu0 0.0
      %1183 = vmatprep.subr.mxu0 0.0
      %1184 = vmatpush1.msra.mxu0 0.0
      %1185 = vmatprep.mubr.f32.mxu0 0.0
      %1186 = vmatmul.mubr.f32.gmra.mrb[0].mxu0 %v1116
      %v1187 = vpop.f32.mrb[0].mxu0
      %v1188 = vadd.f32 %v1114, %v1187
      %v1189 = vpop.f32.mrb[0].mxu0
      %1190 = vmatprep.mubr.f32.mxu0 0.0
      %1191 = vmatmul.mubr.f32.gmra.mrb[0].mxu0 %v1119
      %v1192 = vpop.f32.mrb[0].mxu0
      %v1193 = vadd.f32 %v1114, %v1192
      %v1194 = vpop.f32.mrb[0].mxu0
      %1195 = vdwg.mxu0
      %v1196 = vmax.f32 %v1188, 0.0
      %v1197 = vmax.f32 %v1193, 0.0
      %v1198 = vlaneseq
      %v1199 = vshrl.u32 %v1198, 7
      %v1200 = vsub.s32 0, %v1199
      %v1201 = vrot.slane %v853, %v1200
      %v1203 = vsel %vm713, %v1196, 0
      %v1206 = vsel %vm713, %v1197, 0
      %1208 = vmatprep.subr.mxu0 0.0
      %1209 = vmatpush1.msra.mxu0 %v843
      %1210 = vmatprep.subr.mxu0 0.0
      %1211 = vmatpush1.msra.mxu0 %v844
      %1212 = vmatprep.subr.mxu0 0.0
      %1213 = vmatpush1.msra.mxu0 %v845
      %1214 = vmatprep.subr.mxu0 0.0
      %1215 = vmatpush1.msra.mxu0 %v846
      %1216 = vmatprep.subr.mxu0 0.0
      %1217 = vmatpush1.msra.mxu0 %v847
      %1218 = vmatprep.subr.mxu0 0.0
      %1219 = vmatpush1.msra.mxu0 %v848
      %1220 = vmatprep.subr.mxu0 0.0
      %1221 = vmatpush1.msra.mxu0 %v849
      %1222 = vmatprep.subr.mxu0 0.0
      %1223 = vmatpush1.msra.mxu0 %v850
      %1224 = vmatprep.subr.mxu0 0.0
      %1225 = vmatpush1.msra.mxu0 0.0
      %1226 = vmatprep.subr.mxu0 0.0
      %1227 = vmatpush1.msra.mxu0 0.0
      %1228 = vmatprep.subr.mxu0 0.0
      %1229 = vmatpush1.msra.mxu0 0.0
      %1230 = vmatprep.subr.mxu0 0.0
      %1231 = vmatpush1.msra.mxu0 0.0
      %1232 = vmatprep.subr.mxu0 0.0
      %1233 = vmatpush1.msra.mxu0 0.0
      %1234 = vmatprep.subr.mxu0 0.0
      %1235 = vmatpush1.msra.mxu0 0.0
      %1236 = vmatprep.subr.mxu0 0.0
      %1237 = vmatpush1.msra.mxu0 0.0
      %1238 = vmatprep.subr.mxu0 0.0
      %1239 = vmatpush1.msra.mxu0 0.0
      %1240 = vmatprep.subr.mxu0 0.0
      %1241 = vmatpush1.msra.mxu0 0.0
      %1242 = vmatprep.subr.mxu0 0.0
      %1243 = vmatpush1.msra.mxu0 0.0
      %1244 = vmatprep.subr.mxu0 0.0
      %1245 = vmatpush1.msra.mxu0 0.0
      %1246 = vmatprep.subr.mxu0 0.0
      %1247 = vmatpush1.msra.mxu0 0.0
      %1248 = vmatprep.subr.mxu0 0.0
      %1249 = vmatpush1.msra.mxu0 0.0
      %1250 = vmatprep.subr.mxu0 0.0
      %1251 = vmatpush1.msra.mxu0 0.0
      %1252 = vmatprep.subr.mxu0 0.0
      %1253 = vmatpush1.msra.mxu0 0.0
      %1254 = vmatprep.subr.mxu0 0.0
      %1255 = vmatpush1.msra.mxu0 0.0
      %1256 = vmatprep.subr.mxu0 0.0
      %1257 = vmatpush1.msra.mxu0 0.0
      %1258 = vmatprep.subr.mxu0 0.0
      %1259 = vmatpush1.msra.mxu0 0.0
      %1260 = vmatprep.subr.mxu0 0.0
      %1261 = vmatpush1.msra.mxu0 0.0
      %1262 = vmatprep.subr.mxu0 0.0
      %1263 = vmatpush1.msra.mxu0 0.0
      %1264 = vmatprep.subr.mxu0 0.0
      %1265 = vmatpush1.msra.mxu0 0.0
      %1266 = vmatprep.subr.mxu0 0.0
      %1267 = vmatpush1.msra.mxu0 0.0
      %1268 = vmatprep.subr.mxu0 0.0
      %1269 = vmatpush1.msra.mxu0 0.0
      %1270 = vmatprep.subr.mxu0 0.0
      %1271 = vmatpush1.msra.mxu0 0.0
      %1272 = vmatprep.mubr.f32.mxu0 0.0
      %1273 = vmatmul.mubr.f32.gmra.mrb[0].mxu0 %v1203
      %v1274 = vpop.f32.mrb[0].mxu0
      %v1275 = vadd.f32 %v1201, %v1274
      %v1276 = vpop.f32.mrb[0].mxu0
      %1277 = vmatprep.mubr.f32.mxu0 0.0
      %1278 = vmatmul.mubr.f32.gmra.mrb[0].mxu0 %v1206
      %v1279 = vpop.f32.mrb[0].mxu0
      %v1280 = vadd.f32 %v1201, %v1279
      %v1281 = vpop.f32.mrb[0].mxu0
      %1282 = vdwg.mxu0
      %v1283 = vmax.f32 %v1275, 0.0
      %v1284 = vmax.f32 %v1280, 0.0
      %v1285 = vsel %vm338, %v1283, 0.0
      %v1286 = vsel %vm338, %v1284, 0.0
      %v1287 = vadd.f32 %v1285, %v1286
      %v1288 = vrot.slane %v1287, 4
      %v1289 = vadd.f32 %v1287, %v1288
      %v1290 = vrot.slane %v1289, 2
      %v1291 = vadd.f32 %v1289, %v1290
      %v1292 = vrot.slane %v1291, 1
      %v1293 = vadd.f32 %v1291, %v1292
      %v1294 = vmul.f32 %v1293, %v806
      %v1295 = vsub.f32 %v1283, %v1294
      %v1296 = vsub.f32 %v1284, %v1294
      %v1297 = vmul.f32 %v1295, %v1295
      %v1298 = vmul.f32 %v1296, %v1296
      %v1299 = vsel %vm338, %v1297, 0.0
      %v1300 = vsel %vm338, %v1298, 0.0
      %v1301 = vadd.f32 %v1299, %v1300
      %v1302 = vrot.slane %v1301, 4
      %v1303 = vadd.f32 %v1301, %v1302
      %v1304 = vrot.slane %v1303, 2
      %v1305 = vadd.f32 %v1303, %v1304
      %v1306 = vrot.slane %v1305, 1
      %v1307 = vadd.f32 %v1305, %v1306
      %v1308 = vmul.f32 %v1307, %v806
      %v1309 = vadd.f32 %v1308, 1e-05
      %v1310 = vrsqrt.pop %v1309
      %v1311 = vmul.f32 %v1295, %v1310
      %v1312 = vmul.f32 %v1296, %v1310
      %v1313 = vlaneseq
      %v1314 = vshrl.u32 %v1313, 7
      %v1315 = vsub.s32 0, %v1314
      %v1316 = vrot.slane %v854, %v1315
      %v1317 = vmul.f32 %v1311, %v1316
      %v1318 = vmul.f32 %v1312, %v1316
      %v1319 = vlaneseq
      %v1320 = vshrl.u32 %v1319, 7
      %v1321 = vsub.s32 0, %v1320
      %v1322 = vrot.slane %v855, %v1321
      %v1323 = vadd.f32 %v1317, %v1322
      %v1324 = vadd.f32 %v1318, %v1322
      %1325 = vst.msk [vmem:[%s261] sm:$0xff] %vm338, %v1323
      %1326 = vst.msk [vmem:[%s261 + $0x8] sm:$0xff] %vm338, %v1324
      %p1327 = scmp.lt.s32.totalorder %s16, 3
      %s1328 = scalar_select %p1327, %s16, 3
      %s1329 = smul.addr %s1328, 2
      %s1330 = smul.addr %s1329, 8
      %s1331 = scalar_lea.vmem %s5, %s1330
      // Predicated region
      $region41: #{forward.1} parent=39 // pred_check
        %p1332 = pneg %p154
      $region42: #{forward.1} parent=39 // pred_check_branch
        %1334 = sbr.rel (%p1332) target = $region44
      $region43: #{forward.1} parent=39 // pred_region
        _
      $region44: #{forward.1} parent=39 // pred_fallthru
        _
    $region40: #{forward.1} parent=5 // pred_fallthru
      _
    %p1335 = scmp.le.s32.totalorder 2, %s11
    // Predicated region
    $region45: #{forward.1} parent=5 // pred_check
      %p1336 = pneg %p1335
    $region46: #{forward.1} parent=5 // pred_check_branch
      %1338 = sbr.rel (%p1336) target = $region48
    $region47: #{forward.1} parent=5 // pred_region
      %s1339 = ssub.s32 %s11, 2
      // Predicated region
      $region49: #{forward.1} parent=47 // pred_check
        %p1340 = pneg %p160
      $region50: #{forward.1} parent=47 // pred_check_branch
        %1342 = sbr.rel (%p1340) target = $region52
      $region51: #{forward.1} parent=47 // pred_region
        %p1343 = scmp.lt.s32.totalorder %s17, 3
        %s1344 = scalar_select %p1343, %s17, 3
        %s1345 = smul.addr %s1344, 2
        %s1346 = smul.addr %s1345, 8
        %s1347 = scalar_lea.vmem %s5, %s1346
      $region52: #{forward.1} parent=47 // pred_fallthru
        _
    $region48: #{forward.1} parent=5 // pred_fallthru
      _
  $region6: #{forward.1} parent=0 // loop_footer
    %s15 = sadd.s32 1, %s11
  $region7: #{forward.1} parent=0 // loop_footer_branch
    %10 = sbr.rel target = $region3
  $region8: #{forward.1} parent=0 // loop_exit
    _

</llo_original>
